<compile_context>
chip_gen: v6e
topology: v6e:2x2x1
jax: 0.10.0
libtpu: 0.0.40
codegen_flags: <defaults>
</compile_context>

<pallas_src>
import jax
import jax.numpy as jnp
import numpy as np
from jax.experimental import pallas as pl
from jax.experimental.pallas import tpu as pltpu


def _round_up(x, m):
    return ((x + m - 1) // m) * m


# ----------------------------------------------------------------------------
# Deterministic "parameters": fused windowed DFT basis and mel filterbank.
# ----------------------------------------------------------------------------
def make_dft_basis(n_fft, n_freq_pad, dtype=jnp.float32):
    """Fused basis [window*cos | -window*sin], shape (n_fft, 2*n_freq_pad).

    Columns beyond n_freq (= n_fft//2 + 1) are zero, so padded bins carry
    exactly zero power.
    """
    n_freq = n_fft // 2 + 1
    n = np.arange(n_fft, dtype=np.float64)
    k = np.arange(n_freq, dtype=np.float64)
    window = 0.5 - 0.5 * np.cos(2.0 * np.pi * n / n_fft)           # periodic Hann
    angle = 2.0 * np.pi * np.outer(n, k) / n_fft                   # (n_fft, n_freq)
    basis = np.zeros((n_fft, 2 * n_freq_pad), dtype=np.float32)
    basis[:, :n_freq] = window[:, None] * np.cos(angle)
    basis[:, n_freq_pad:n_freq_pad + n_freq] = -window[:, None] * np.sin(angle)
    return jnp.asarray(basis, dtype=dtype)


def make_mel_filterbank(sr, n_fft, n_mels, n_freq_pad, fmin=0.0, fmax=None):
    """HTK-scale triangular mel filterbank, shape (n_freq_pad, n_mels).

    Rows beyond n_freq are zero (they only ever see zero power anyway).
    """
    if fmax is None:
        fmax = sr / 2.0
    n_freq = n_fft // 2 + 1

    def hz_to_mel(f):
        return 2595.0 * np.log10(1.0 + f / 700.0)

    def mel_to_hz(m):
        return 700.0 * (10.0 ** (m / 2595.0) - 1.0)

    mel_pts = np.linspace(hz_to_mel(fmin), hz_to_mel(fmax), n_mels + 2)
    hz_pts = mel_to_hz(mel_pts)                                    # (n_mels+2,)
    freqs = np.linspace(0.0, sr / 2.0, n_freq)                     # (n_freq,)

    f_lo = hz_pts[:-2][None, :]
    f_ce = hz_pts[1:-1][None, :]
    f_hi = hz_pts[2:][None, :]
    f = freqs[:, None]

    up = (f - f_lo) / np.maximum(f_ce - f_lo, 1e-10)
    down = (f_hi - f) / np.maximum(f_hi - f_ce, 1e-10)
    fb = np.maximum(0.0, np.minimum(up, down)).astype(np.float32)  # (n_freq, n_mels)

    fb_pad = np.zeros((n_freq_pad, n_mels), dtype=np.float32)
    fb_pad[:n_freq] = fb
    return jnp.asarray(fb_pad)


# ----------------------------------------------------------------------------
# Pallas kernel: per (batch, frame-tile) block:
#   y     = frames @ [cos | -sin]        (one wide MXU matmul)
#   power = re^2 + im^2                  (VPU, f32)
#   mel   = power @ mel_fb               (MXU)
#   out   = mel.T                        (XLU transpose, written lane-dense)
# ----------------------------------------------------------------------------
def mel_spec_kernel(frames_ref, basis_ref, melfb_ref, out_ref):
    x = frames_ref[0]                                              # (tile_f, n_fft)
    y = jnp.dot(x, basis_ref[...], preferred_element_type=jnp.float32)
    half = basis_ref.shape[1] // 2                                 # n_freq_pad (mult of 128)
    re = y[:, :half]
    im = y[:, half:]
    power = re * re + im * im                                      # power=2.0 spectrum
    mel = jnp.dot(power, melfb_ref[...], preferred_element_type=jnp.float32)
    out_ref[0] = mel.T                                             # (n_mels, tile_f)


def mel_spectrogram(waveform, *, sample_rate, n_fft, hop_length, n_mels,
                    tile_f=128, compute_dtype=jnp.float32):
    """waveform: (B, T) float32  ->  (B, n_mels, n_frames) float32.

    compute_dtype=jnp.bfloat16 is recommended on v6e/v7x (bf16-native MXU,
    halves basis VMEM); accumulation is always f32.
    """
    B, T = waveform.shape
    n_freq = n_fft // 2 + 1
    n_freq_pad = _round_up(n_freq, 128)

    # --- glue: center (reflect) padding + framing (XLA gather) -------------
    pad = n_fft // 2
    wav = jnp.pad(waveform, ((0, 0), (pad, pad)), mode="reflect")
    n_frames = 1 + (wav.shape[1] - n_fft) // hop_length
    idx = (jnp.arange(n_frames)[:, None] * hop_length
           + jnp.arange(n_fft)[None, :])                           # (n_frames, n_fft)
    frames = wav[:, idx].astype(compute_dtype)                     # (B, n_frames, n_fft)

    n_frames_pad = _round_up(n_frames, tile_f)
    if n_frames_pad != n_frames:                                   # zero frames -> zero mel
        frames = jnp.pad(frames, ((0, 0), (0, n_frames_pad - n_frames), (0, 0)))

    # --- deterministic parameters ------------------------------------------
    basis = make_dft_basis(n_fft, n_freq_pad, compute_dtype)       # (n_fft, 2*n_freq_pad)
    mel_fb = make_mel_filterbank(sample_rate, n_fft, n_mels,
                                 n_freq_pad)                       # (n_freq_pad, n_mels)

    # --- VMEM budget / cost estimate ----------------------------------------
    itemsize = jnp.dtype(compute_dtype).itemsize
    vmem_bytes = (2 * basis.size * itemsize                        # basis (worst case 2-buf)
                  + 2 * mel_fb.size * 4
                  + 2 * tile_f * n_fft * itemsize                  # frames, double-buffered
                  + 2 * n_mels * tile_f * 4                        # output, double-buffered
                  + 4 * tile_f * n_freq_pad * 4)                   # y / re / im / power temps
    vmem_limit = int(min(max(vmem_bytes + (16 << 20), 32 << 20), 100 << 20))

    flops = (2 * B * n_frames_pad * n_fft * (2 * n_freq_pad)       # fused DFT matmul
             + 3 * B * n_frames_pad * n_freq_pad                   # power elementwise
             + 2 * B * n_frames_pad * n_freq_pad * n_mels)         # mel matmul
    bytes_accessed = (frames.size * itemsize + basis.size * itemsize
                      + mel_fb.size * 4 + B * n_mels * n_frames_pad * 4)

    grid = (B, n_frames_pad // tile_f)

    def build(single_buffer_consts):
        const_kw = ({"pipeline_mode": pl.Buffered(1)}
                    if single_buffer_consts else {})
        return pl.pallas_call(
            mel_spec_kernel,
            out_shape=jax.ShapeDtypeStruct((B, n_mels, n_frames_pad), jnp.float32),
            grid_spec=pltpu.PrefetchScalarGridSpec(
                num_scalar_prefetch=0,
                grid=grid,
                in_specs=[
                    pl.BlockSpec((1, tile_f, n_fft), lambda b, f: (b, f, 0)),
                    pl.BlockSpec((n_fft, 2 * n_freq_pad),
                                 lambda b, f: (0, 0), **const_kw),
                    pl.BlockSpec((n_freq_pad, n_mels),
                                 lambda b, f: (0, 0), **const_kw),
                ],
                out_specs=pl.BlockSpec((1, n_mels, tile_f), lambda b, f: (b, 0, f)),
            ),
            compiler_params=pltpu.CompilerParams(
                dimension_semantics=("parallel", "parallel"),
                vmem_limit_bytes=vmem_limit),
            cost_estimate=pl.CostEstimate(
                flops=int(flops), transcendentals=0,
                bytes_accessed=int(bytes_accessed)),
        )

    try:
        out = build(True)(frames, basis, mel_fb)
    except Exception:
        # Fallback if single-buffered constants (pl.Buffered(1)) are not
        # supported by this JAX build; vmem_limit already budgets for 2 buffers.
        out = build(False)(frames, basis, mel_fb)

    # Kernel already wrote (B, n_mels, n_frames_pad); just drop padded frames.
    return out[:, :, :n_frames]


# ----------------------------------------------------------------------------
# Pure-JAX f32 reference for correctness check.
# ----------------------------------------------------------------------------
def mel_spectrogram_ref(waveform, *, sample_rate, n_fft, hop_length, n_mels):
    pad = n_fft // 2
    wav = jnp.pad(waveform, ((0, 0), (pad, pad)), mode="reflect")
    n_frames = 1 + (wav.shape[1] - n_fft) // hop_length
    idx = jnp.arange(n_frames)[:, None] * hop_length + jnp.arange(n_fft)[None, :]
    frames = wav[:, idx].astype(jnp.float32)
    n_freq = n_fft // 2 + 1
    basis = make_dft_basis(n_fft, n_freq, jnp.float32)             # unpadded
    cos_k, sin_k = basis[:, :n_freq], basis[:, n_freq:]
    mel_fb = make_mel_filterbank(sample_rate, n_fft, n_mels, n_freq)
    re = jnp.einsum("bfn,nk->bfk", frames, cos_k)
    im = jnp.einsum("bfn,nk->bfk", frames, sin_k)
    power = re * re + im * im
    mel = jnp.einsum("bfk,km->bfm", power, mel_fb)
    return jnp.transpose(mel, (0, 2, 1))


if __name__ == "__main__":
    # Small, module-consistent shapes (defaults n_fft=2048 / n_mels=128 / hop=172
    # scaled down for a quick test; n_frames=126 exercises frame-tile padding).
    SAMPLE_RATE = 16000
    N_FFT = 256
    HOP = 64
    N_MELS = 32
    B = 2
    T = 8000          # -> n_frames = 1 + 8000//64 = 126

    key = jax.random.PRNGKey(0)
    waveform = jax.random.normal(key, (B, T), dtype=jnp.float32)

    out = jax.block_until_ready(mel_spectrogram(
        waveform, sample_rate=SAMPLE_RATE, n_fft=N_FFT, hop_length=HOP,
        n_mels=N_MELS, tile_f=128, compute_dtype=jnp.float32))

    ref = jax.block_until_ready(mel_spectrogram_ref(
        waveform, sample_rate=SAMPLE_RATE, n_fft=N_FFT, hop_length=HOP,
        n_mels=N_MELS))

    n_frames = 1 + T // HOP
    assert out.shape == (B, N_MELS, n_frames), out.shape
    assert jnp.allclose(out, ref, rtol=2e-3, atol=1e-3), "f32 mismatch vs reference"

    # bf16-basis path (recommended on v6e/v7x). |X|^2 squares the bf16 rounding
    # error, so use a looser tolerance here.
    out_bf16 = jax.block_until_ready(mel_spectrogram(
        waveform, sample_rate=SAMPLE_RATE, n_fft=N_FFT, hop_length=HOP,
        n_mels=N_MELS, tile_f=128, compute_dtype=jnp.bfloat16))
    scale = float(jnp.max(jnp.abs(ref)))
    assert out_bf16.shape == (B, N_MELS, n_frames), out_bf16.shape
    assert jnp.allclose(out_bf16, ref, rtol=5e-2, atol=5e-2 * scale), \
        "bf16 path too far off reference"

    print("KERNEL_OK")
</pallas_src>

<mosaic_0001>
module attributes {stable_mosaic.version = 11 : i64} {
  func.func @mel_spec_kernel(%arg0: i32, %arg1: i32, %arg2: memref<1x128x256xf32, #tpu.memory_space<vmem>>, %arg3: memref<256x512xf32, #tpu.memory_space<vmem>>, %arg4: memref<256x32xf32, #tpu.memory_space<vmem>>, %arg5: memref<1x32x128xf32, #tpu.memory_space<vmem>>) attributes {dimension_semantics = [#tpu.dimension_semantics<parallel>, #tpu.dimension_semantics<parallel>], iteration_bounds = array<i64: 2, 1>, scalar_prefetch = 0 : i64, scratch_operands = 0 : i64, tpu.core_type = #tpu.core_type<tc>, window_params = [{transform_indices = @transform_0, window_bounds = array<i64: 1, 128, 256>}, {pipeline_mode = #tpu.pipeline_mode<synchronous>, transform_indices = @transform_1, window_bounds = array<i64: 256, 512>}, {pipeline_mode = #tpu.pipeline_mode<synchronous>, transform_indices = @transform_2, window_bounds = array<i64: 256, 32>}, {transform_indices = @transform_3, window_bounds = array<i64: 1, 32, 128>}]} {
    %c0 = arith.constant 0 : index
    %c0_0 = arith.constant 0 : index
    %c0_1 = arith.constant 0 : index
    %0 = vector.load %arg2[%c0, %c0_0, %c0_1] : memref<1x128x256xf32, #tpu.memory_space<vmem>>, vector<1x128x256xf32>
    %1 = vector.shape_cast %0 : vector<1x128x256xf32> to vector<128x256xf32>
    %c0_2 = arith.constant 0 : index
    %c0_3 = arith.constant 0 : index
    %2 = vector.load %arg3[%c0_2, %c0_3] : memref<256x512xf32, #tpu.memory_space<vmem>>, vector<256x512xf32>
    %cst = arith.constant dense<0.000000e+00> : vector<128x512xf32>
    %3 = tpu.matmul %1, %2, %cst {dimension_numbers = #tpu.dot_dimension_numbers<[1], [0], [0], [1], [0, 0, 1, 1], [], []>} : vector<128x256xf32>, vector<256x512xf32>, vector<128x512xf32> -> vector<128x512xf32>
    %4 = vector.extract_strided_slice %3 {offsets = [0, 0], sizes = [128, 256], strides = [1, 1]} : vector<128x512xf32> to vector<128x256xf32>
    %5 = vector.extract_strided_slice %3 {offsets = [0, 256], sizes = [128, 256], strides = [1, 1]} : vector<128x512xf32> to vector<128x256xf32>
    %6 = arith.mulf %4, %4 : vector<128x256xf32>
    %7 = arith.mulf %5, %5 : vector<128x256xf32>
    %8 = arith.addf %6, %7 : vector<128x256xf32>
    %c0_4 = arith.constant 0 : index
    %c0_5 = arith.constant 0 : index
    %9 = vector.load %arg4[%c0_4, %c0_5] : memref<256x32xf32, #tpu.memory_space<vmem>>, vector<256x32xf32>
    %cst_6 = arith.constant dense<0.000000e+00> : vector<128x32xf32>
    %10 = tpu.matmul %8, %9, %cst_6 {dimension_numbers = #tpu.dot_dimension_numbers<[1], [0], [0], [1], [0, 0, 1, 1], [], []>} : vector<128x256xf32>, vector<256x32xf32>, vector<128x32xf32> -> vector<128x32xf32>
    %11 = tpu.transpose %10, [1, 0] : vector<128x32xf32> -> vector<32x128xf32>
    %c0_7 = arith.constant 0 : index
    %c0_8 = arith.constant 0 : index
    %c0_9 = arith.constant 0 : index
    %12 = vector.load %arg5[%c0_7, %c0_8, %c0_9] : memref<1x32x128xf32, #tpu.memory_space<vmem>>, vector<1x32x128xf32>
    %13 = vector.shape_cast %12 : vector<1x32x128xf32> to vector<32x128xf32>
    %14 = vector.shape_cast %11 : vector<32x128xf32> to vector<1x32x128xf32>
    tpu.vector_store %arg5[%c0_7, %c0_8, %c0_9], %14 {strides = array<i32>} : memref<1x32x128xf32, #tpu.memory_space<vmem>>, vector<1x32x128xf32>,
    return
  }
  func.func @transform_0(%arg0: i32, %arg1: i32) -> (i32, i32, i32) {
    %c0_i32 = arith.constant 0 : i32
    %c0_i32_0 = arith.constant 0 : i32
    return %arg0, %arg1, %c0_i32 : i32, i32, i32
  }
  func.func @transform_1(%arg0: i32, %arg1: i32) -> (i32, i32) {
    %c0_i32 = arith.constant 0 : i32
    %c0_i32_0 = arith.constant 0 : i32
    %c0_i32_1 = arith.constant 0 : i32
    return %c0_i32, %c0_i32_0 : i32, i32
  }
  func.func @transform_2(%arg0: i32, %arg1: i32) -> (i32, i32) {
    %c0_i32 = arith.constant 0 : i32
    %c0_i32_0 = arith.constant 0 : i32
    %c0_i32_1 = arith.constant 0 : i32
    return %c0_i32, %c0_i32_0 : i32, i32
  }
  func.func @transform_3(%arg0: i32, %arg1: i32) -> (i32, i32, i32) {
    %c0_i32 = arith.constant 0 : i32
    %c0_i32_0 = arith.constant 0 : i32
    return %arg0, %c0_i32, %arg1 : i32, i32, i32
  }
}

module attributes {stable_mosaic.version = 11 : i64} {
  func.func @mel_spec_kernel(%arg0: i32, %arg1: i32, %arg2: memref<1x128x256xf32, #tpu.memory_space<vmem>>, %arg3: memref<256x512xf32, #tpu.memory_space<vmem>>, %arg4: memref<256x32xf32, #tpu.memory_space<vmem>>, %arg5: memref<1x32x128xf32, #tpu.memory_space<vmem>>) attributes {dimension_semantics = [#tpu.dimension_semantics<parallel>, #tpu.dimension_semantics<parallel>], iteration_bounds = array<i64: 2, 1>, scalar_prefetch = 0 : i64, scratch_operands = 0 : i64, tpu.core_type = #tpu.core_type<tc>, window_params = [{transform_indices = @transform_0, window_bounds = array<i64: 1, 128, 256>}, {pipeline_mode = #tpu.pipeline_mode<synchronous>, transform_indices = @transform_1, window_bounds = array<i64: 256, 512>}, {pipeline_mode = #tpu.pipeline_mode<synchronous>, transform_indices = @transform_2, window_bounds = array<i64: 256, 32>}, {transform_indices = @transform_3, window_bounds = array<i64: 1, 32, 128>}]} {
    %c0 = arith.constant 0 : index
    %c0_0 = arith.constant 0 : index
    %c0_1 = arith.constant 0 : index
    %0 = vector.load %arg2[%c0, %c0_0, %c0_1] : memref<1x128x256xf32, #tpu.memory_space<vmem>>, vector<1x128x256xf32>
    %1 = vector.shape_cast %0 : vector<1x128x256xf32> to vector<128x256xf32>
    %c0_2 = arith.constant 0 : index
    %c0_3 = arith.constant 0 : index
    %2 = vector.load %arg3[%c0_2, %c0_3] : memref<256x512xf32, #tpu.memory_space<vmem>>, vector<256x512xf32>
    %cst = arith.constant dense<0.000000e+00> : vector<128x512xf32>
    %3 = tpu.matmul %1, %2, %cst {dimension_numbers = #tpu.dot_dimension_numbers<[1], [0], [0], [1], [0, 0, 1, 1], [], []>} : vector<128x256xf32>, vector<256x512xf32>, vector<128x512xf32> -> vector<128x512xf32>
    %4 = vector.extract_strided_slice %3 {offsets = [0, 0], sizes = [128, 256], strides = [1, 1]} : vector<128x512xf32> to vector<128x256xf32>
    %5 = vector.extract_strided_slice %3 {offsets = [0, 256], sizes = [128, 256], strides = [1, 1]} : vector<128x512xf32> to vector<128x256xf32>
    %6 = arith.mulf %4, %4 : vector<128x256xf32>
    %7 = arith.mulf %5, %5 : vector<128x256xf32>
    %8 = arith.addf %6, %7 : vector<128x256xf32>
    %c0_4 = arith.constant 0 : index
    %c0_5 = arith.constant 0 : index
    %9 = vector.load %arg4[%c0_4, %c0_5] : memref<256x32xf32, #tpu.memory_space<vmem>>, vector<256x32xf32>
    %cst_6 = arith.constant dense<0.000000e+00> : vector<128x32xf32>
    %10 = tpu.matmul %8, %9, %cst_6 {dimension_numbers = #tpu.dot_dimension_numbers<[1], [0], [0], [1], [0, 0, 1, 1], [], []>} : vector<128x256xf32>, vector<256x32xf32>, vector<128x32xf32> -> vector<128x32xf32>
    %11 = tpu.transpose %10, [1, 0] : vector<128x32xf32> -> vector<32x128xf32>
    %c0_7 = arith.constant 0 : index
    %c0_8 = arith.constant 0 : index
    %c0_9 = arith.constant 0 : index
    %12 = vector.load %arg5[%c0_7, %c0_8, %c0_9] : memref<1x32x128xf32, #tpu.memory_space<vmem>>, vector<1x32x128xf32>
    %13 = vector.shape_cast %12 : vector<1x32x128xf32> to vector<32x128xf32>
    %14 = vector.shape_cast %11 : vector<32x128xf32> to vector<1x32x128xf32>
    tpu.vector_store %arg5[%c0_7, %c0_8, %c0_9], %14 {strides = array<i32>} : memref<1x32x128xf32, #tpu.memory_space<vmem>>, vector<1x32x128xf32>,
    return
  }
  func.func @transform_0(%arg0: i32, %arg1: i32) -> (i32, i32, i32) {
    %c0_i32 = arith.constant 0 : i32
    %c0_i32_0 = arith.constant 0 : i32
    return %arg0, %arg1, %c0_i32 : i32, i32, i32
  }
  func.func @transform_1(%arg0: i32, %arg1: i32) -> (i32, i32) {
    %c0_i32 = arith.constant 0 : i32
    %c0_i32_0 = arith.constant 0 : i32
    %c0_i32_1 = arith.constant 0 : i32
    return %c0_i32, %c0_i32_0 : i32, i32
  }
  func.func @transform_2(%arg0: i32, %arg1: i32) -> (i32, i32) {
    %c0_i32 = arith.constant 0 : i32
    %c0_i32_0 = arith.constant 0 : i32
    %c0_i32_1 = arith.constant 0 : i32
    return %c0_i32, %c0_i32_0 : i32, i32
  }
  func.func @transform_3(%arg0: i32, %arg1: i32) -> (i32, i32, i32) {
    %c0_i32 = arith.constant 0 : i32
    %c0_i32_0 = arith.constant 0 : i32
    return %arg0, %c0_i32, %arg1 : i32, i32, i32
  }
}

</mosaic_0001>

<llo_original>
// kernel: tpu_custom_call.1
$region0: #{tpu_custom_call.1}
  #allocation0 [shape = 'u32[]', space=smem, size = 0x4, offset = 0x4, fixed_abs, tag = 'smem constant byte address 0x4 - core index']
  #allocation1 [shape = 'u32[144,128]{1,0:T(1,128)}', space=vmem, size = 0x12000, scoped, tag = 'internal scratch']
  %s0 = inlined_call_operand.hbm [shape: f32[2,128,256], index: 0, kind: input, shape index: {}]
  %s1 = inlined_call_operand.hbm [shape: f32[256,512], index: 1, kind: input, shape index: {}]
  %s2 = inlined_call_operand.vmem [shape: f32[256,32], index: 2, kind: input, shape index: {}]
  %s3 = inlined_call_operand.hbm [shape: f32[2,32,128], index: 3, kind: output, shape index: {}]
  %s4 = sld [smem:[#allocation0]]
  $region53: #{tpu_custom_call.1} parent=0
    _
  %s6 = ssub.s32 1, %s4
  %s7 = scalar_select 0, %s6, %s4
  $region1: #{tpu_custom_call.1} parent=0
    #allocation2 [shape = 'u8[262144]{0}', space=vmem, size = 0x40000, scoped, tag = 'input window, operand 0']
    #allocation3 [shape = 's32[2]{0}', space=sflag, size = 0x8, scoped, tag = 'scoped memory for tpu_custom_call.1']
    #allocation4 [shape = 's32[2]{0}', space=sflag, size = 0x8, scoped, tag = 'scoped memory for tpu_custom_call.1']
    #allocation5 [shape = 'u8[524288]{0}', space=vmem, size = 0x80000, scoped, tag = 'input window, operand 1, single buffered']
    #allocation6 [shape = 's32[1]{0}', space=sflag, size = 0x4, scoped, tag = 'scoped memory for tpu_custom_call.1']
    #allocation7 [shape = 'u8[32768]{0}', space=vmem, size = 0x8000, scoped, tag = 'output window, operand 0']
    %8 = vsyncpa [#allocation3], 0
    %s9 = scalar_lea.sflag [#allocation3], 1
    %10 = vsyncpa %s9, 0
    %11 = vsyncpa [#allocation6], 0
    %12 = vsyncpa [#allocation4], 0
    %s13 = scalar_lea.sflag [#allocation4], 1
    %14 = vsyncpa %s13, 0
    loop: start=0, step=1, limit=4
    $region2: #{tpu_custom_call.1} parent=1 // loop_pre_header
      _
    $region3: #{tpu_custom_call.1} parent=1 // loop_header
      %s16 = sphi 0, %s20
      %p17 = scmp.ge.s32.totalorder %s16, 4
      %s23 = sphi 0, %s35
      %s24 = sphi 0, %s31
      %s25 = sphi 0, %s23
      %s26 = sphi 0, %s24
      %s27 = sphi 0, %s25
      %s28 = sphi 0, %s26
      %s40 = sphi 0, %s42
      %s43 = sphi 0, %s40
      %s44 = sphi 0, %s43
      %s60 = sphi 0, %s44
      %s64 = sphi 0, %s64
      %s66 = sphi 0, %s64
      %s67 = sphi 0, %s66
      %s81 = sphi 0, %s67
      %s85 = sphi 0, %s85
      %s87 = sphi 0, %s85
      %s88 = sphi 0, %s87
      %s102 = sphi 0, %s88
      %s110 = sphi 0, %s112
      %s113 = sphi 0, %s110
      %s114 = sphi 0, %s113
      %s130 = sphi 0, %s114
    $region4: #{tpu_custom_call.1} parent=1 // loop_header_branch
      %19 = sbr.rel (%p17) target = $region8
    $region5: #{tpu_custom_call.1} parent=1 // loop_body
      %s21 = ssub.s32 %s16, 1
      %s22 = ssub.s32 %s16, 2
      %s29 = sadd.s32 1, %s24
      %p30 = scmp.ge.s32.totalorder %s29, 1
      %s31 = scalar_select %p30, 0, %s29
      %s32 = sadd.s32 1, %s23
      %s33 = scalar_select %p30, %s32, %s23
      %p34 = scmp.ge.s32.totalorder %s33, 2
      %s35 = scalar_select %p34, 0, %s33
      %s36 = ssub.s32 %s23, %s35
      %s37 = ssub.s32 %s24, %s31
      %s38 = sor.u32 %s36, %s37
      %p39 = scmp.eq.s32.totalorder %s38, 0
      %s41 = sadd.s32 %s40, 1
      %s42 = scalar_select %p39, %s40, %s41
      %p45 = pneg %p39
      %p46 = scmp.eq.s32.totalorder %s16, 1
      %p47 = por %p45, %p46
      %p48 = scmp.ne.s32.totalorder %s40, %s43
      %p49 = scmp.eq.s32.totalorder %s16, 0
      %p50 = por %p48, %p49
      %p51 = scmp.ne.s32.totalorder %s40, %s43
      %p52 = scmp.eq.s32.totalorder %s21, 1
      %p53 = por %p51, %p52
      %p54 = scmp.ne.s32.totalorder %s43, %s44
      %p55 = scmp.eq.s32.totalorder %s21, 0
      %p56 = por %p54, %p55
      %p57 = scmp.ne.s32.totalorder %s43, %s44
      %p58 = scmp.eq.s32.totalorder %s22, 1
      %p59 = por %p57, %p58
      %p61 = scmp.ne.s32.totalorder %s44, %s60
      %p62 = scmp.eq.s32.totalorder %s22, 0
      %p63 = por %p61, %p62
      %s65 = sadd.s32 %s64, 1
      %p68 = scmp.eq.s32.totalorder %s16, 1
      %p69 = scmp.ne.s32.totalorder %s64, %s66
      %p70 = scmp.eq.s32.totalorder %s16, 0
      %p71 = por %p69, %p70
      %p72 = scmp.ne.s32.totalorder %s64, %s66
      %p73 = scmp.eq.s32.totalorder %s21, 1
      %p74 = por %p72, %p73
      %p75 = scmp.ne.s32.totalorder %s66, %s67
      %p76 = scmp.eq.s32.totalorder %s21, 0
      %p77 = por %p75, %p76
      %p78 = scmp.ne.s32.totalorder %s66, %s67
      %p79 = scmp.eq.s32.totalorder %s22, 1
      %p80 = por %p78, %p79
      %p82 = scmp.ne.s32.totalorder %s67, %s81
      %p83 = scmp.eq.s32.totalorder %s22, 0
      %p84 = por %p82, %p83
      %s86 = sadd.s32 %s85, 1
      %p89 = scmp.eq.s32.totalorder %s16, 1
      %p90 = scmp.ne.s32.totalorder %s85, %s87
      %p91 = scmp.eq.s32.totalorder %s16, 0
      %p92 = por %p90, %p91
      %p93 = scmp.ne.s32.totalorder %s85, %s87
      %p94 = scmp.eq.s32.totalorder %s21, 1
      %p95 = por %p93, %p94
      %p96 = scmp.ne.s32.totalorder %s87, %s88
      %p97 = scmp.eq.s32.totalorder %s21, 0
      %p98 = por %p96, %p97
      %p99 = scmp.ne.s32.totalorder %s87, %s88
      %p100 = scmp.eq.s32.totalorder %s22, 1
      %p101 = por %p99, %p100
      %p103 = scmp.ne.s32.totalorder %s88, %s102
      %p104 = scmp.eq.s32.totalorder %s22, 0
      %p105 = por %p103, %p104
      %s106 = ssub.s32 %s23, %s35
      %s107 = ssub.s32 %s24, %s31
      %s108 = sor.u32 %s106, %s107
      %p109 = scmp.eq.s32.totalorder %s108, 0
      %s111 = sadd.s32 %s110, 1
      %s112 = scalar_select %p109, %s110, %s111
      %p115 = pneg %p109
      %p116 = scmp.eq.s32.totalorder %s16, 1
      %p117 = por %p115, %p116
      %p118 = scmp.ne.s32.totalorder %s110, %s113
      %p119 = scmp.eq.s32.totalorder %s16, 0
      %p120 = por %p118, %p119
      %p121 = scmp.ne.s32.totalorder %s110, %s113
      %p122 = scmp.eq.s32.totalorder %s21, 1
      %p123 = por %p121, %p122
      %p124 = scmp.ne.s32.totalorder %s113, %s114
      %p125 = scmp.eq.s32.totalorder %s21, 0
      %p126 = por %p124, %p125
      %p127 = scmp.ne.s32.totalorder %s113, %s114
      %p128 = scmp.eq.s32.totalorder %s22, 1
      %p129 = por %p127, %p128
      %p131 = scmp.ne.s32.totalorder %s114, %s130
      %p132 = scmp.eq.s32.totalorder %s22, 0
      %p133 = por %p131, %p132
      %p134 = scmp.le.s32.totalorder 1, %s16
      %p135 = scmp.lt.s32.totalorder %s16, 3
      %p136 = pnand %p134, %p135
      %p137 = pneg %p136
      // Predicated region
      $region9: #{tpu_custom_call.1} parent=5 // pred_check
        _
      $region10: #{tpu_custom_call.1} parent=5 // pred_check_branch
        %139 = sbr.rel (%p136) target = $region12
      $region11: #{tpu_custom_call.1} parent=5 // pred_region
        %s140 = ssub.s32 %s16, 1
        // Predicated region
        $region13: #{tpu_custom_call.1} parent=11 // pred_check
          %p141 = pneg %p77
        $region14: #{tpu_custom_call.1} parent=11 // pred_check_branch
          %143 = sbr.rel (%p141) target = $region16
        $region15: #{tpu_custom_call.1} parent=11 // pred_region
          %s145 = ssub.s32 16384, 16384
          %146 = vsyncadd [#allocation6], %s145
          %s147 = sshll.u32 [#allocation5], 4
          %s148 = int_to_ptr.vmem [resolvable:$true] %s147
          %153 = dma.hbm_to_vmem [thread:$0]  %s1, 16384, %s148, [#allocation6], 512, 512, 32
        $region16: #{tpu_custom_call.1} parent=11 // pred_fallthru
          _
        // Predicated region
        $region17: #{tpu_custom_call.1} parent=11 // pred_check
          %p154 = pneg %p98
        $region18: #{tpu_custom_call.1} parent=11 // pred_check_branch
          %156 = sbr.rel (%p154) target = $region20
        $region19: #{tpu_custom_call.1} parent=11 // pred_region
          _
        $region20: #{tpu_custom_call.1} parent=11 // pred_fallthru
          _
      $region12: #{tpu_custom_call.1} parent=5 // pred_fallthru
        _
      %p157 = scmp.lt.s32.totalorder %s16, 2
      // Predicated region
      $region21: #{tpu_custom_call.1} parent=5 // pred_check
        %p158 = pneg %p157
      $region22: #{tpu_custom_call.1} parent=5 // pred_check_branch
        %160 = sbr.rel (%p158) target = $region24
      $region23: #{tpu_custom_call.1} parent=5 // pred_region
        // Predicated region
        $region25: #{tpu_custom_call.1} parent=23 // pred_check
          %p161 = pneg %p50
        $region26: #{tpu_custom_call.1} parent=23 // pred_check_branch
          %163 = sbr.rel (%p161) target = $region28
        $region27: #{tpu_custom_call.1} parent=23 // pred_region
          %s164 = sand.u32 %s40, 1
          %s165 = scalar_lea.sflag [#allocation3], %s164
          %s166 = sand.u32 %s40, 1
          %s167 = smul.addr %s166, 256
          %s168 = scalar_lea.vmem [#allocation2], %s167
          %s169 = smul.u32 16, %s24
          %s171 = ssub.s32 4096, 4096
          %172 = vsyncadd %s165, %s171
          %s173 = smul.addr %s169, 2
          %s174 = smul.addr %s23, 32
          %s175 = sadd.s32 %s173, %s174
          %s176 = smul.addr %s175, 128
          %s177 = scalar_lea.hbm %s0, %s176
          %s178 = sshll.u32 %s168, 4
          %s179 = int_to_ptr.vmem [resolvable:$true] %s178
          %184 = dma.hbm_to_vmem [thread:$0]  %s177, 4096, %s179, %s165, 256, 256, 16
        $region28: #{tpu_custom_call.1} parent=23 // pred_fallthru
          _
      $region24: #{tpu_custom_call.1} parent=5 // pred_fallthru
        _
      %p185 = scmp.le.s32.totalorder 1, %s16
      %p186 = scmp.lt.s32.totalorder %s16, 3
      %p187 = pnand %p185, %p186
      %p188 = pneg %p187
      // Predicated region
      $region29: #{tpu_custom_call.1} parent=5 // pred_check
        _
      $region30: #{tpu_custom_call.1} parent=5 // pred_check_branch
        %190 = sbr.rel (%p187) target = $region32
      $region31: #{tpu_custom_call.1} parent=5 // pred_region
        %s191 = ssub.s32 %s16, 1
        %s192 = sand.u32 %s43, 1
        %s193 = scalar_lea.sflag [#allocation3], %s192
        %s194 = sand.u32 %s43, 1
        %s195 = smul.addr %s194, 256
        %s196 = scalar_lea.vmem [#allocation2], %s195
        // Predicated region
        $region33: #{tpu_custom_call.1} parent=31 // pred_check
          %p197 = pneg %p56
        $region34: #{tpu_custom_call.1} parent=31 // pred_check_branch
          %199 = sbr.rel (%p197) target = $region36
        $region35: #{tpu_custom_call.1} parent=31 // pred_region
          %200 = dma.done %s193, 4096
        $region36: #{tpu_custom_call.1} parent=31 // pred_fallthru
          _
        // Predicated region
        $region37: #{tpu_custom_call.1} parent=31 // pred_check
          %p201 = pneg %p77
        $region38: #{tpu_custom_call.1} parent=31 // pred_check_branch
          %203 = sbr.rel (%p201) target = $region40
        $region39: #{tpu_custom_call.1} parent=31 // pred_region
          %204 = dma.done [#allocation6], 16384
        $region40: #{tpu_custom_call.1} parent=31 // pred_fallthru
          _
        %s205 = sand.u32 %s43, 1
        %s206 = scalar_lea.sflag [#allocation3], %s205
        %s207 = sand.u32 %s43, 1
        %s208 = smul.addr %s207, 256
        %s209 = scalar_lea.vmem [#allocation2], %s208
        %p210 = pneg %p56
        %p211 = pneg %p53
        %p212 = pneg %p77
        %p213 = pneg %p74
        %p214 = pneg %p98
        %p215 = pneg %p95
        %p216 = pneg %p126
        %p217 = pneg %p123
        %s218 = sand.u32 %s113, 1
        %s219 = scalar_lea.sflag [#allocation4], %s218
        %s220 = sand.u32 %s113, 1
        %s221 = smul.addr %s220, 32
        %s222 = scalar_lea.vmem [#allocation7], %s221
        %s223 = smul.u32 16, %s26
        %v224 = vld [vmem:[%s196] sm:$0xff]
        %v225 = vld [vmem:[%s196 + $0x8] sm:$0xff]
        %v226 = vld [vmem:[%s196 + $0x10] sm:$0xff]
        %v227 = vld [vmem:[%s196 + $0x18] sm:$0xff]
        %v228 = vld [vmem:[%s196 + $0x20] sm:$0xff]
        %v229 = vld [vmem:[%s196 + $0x28] sm:$0xff]
        %v230 = vld [vmem:[%s196 + $0x30] sm:$0xff]
        %v231 = vld [vmem:[%s196 + $0x38] sm:$0xff]
        %v232 = vld [vmem:[%s196 + $0x40] sm:$0xff]
        %v233 = vld [vmem:[%s196 + $0x48] sm:$0xff]
        %v234 = vld [vmem:[%s196 + $0x50] sm:$0xff]
        %v235 = vld [vmem:[%s196 + $0x58] sm:$0xff]
        %v236 = vld [vmem:[%s196 + $0x60] sm:$0xff]
        %v237 = vld [vmem:[%s196 + $0x68] sm:$0xff]
        %v238 = vld [vmem:[%s196 + $0x70] sm:$0xff]
        %v239 = vld [vmem:[%s196 + $0x78] sm:$0xff]
        %v240 = vld [vmem:[%s196 + $0x80] sm:$0xff]
        %v241 = vld [vmem:[%s196 + $0x88] sm:$0xff]
        %v242 = vld [vmem:[%s196 + $0x90] sm:$0xff]
        %v243 = vld [vmem:[%s196 + $0x98] sm:$0xff]
        %v244 = vld [vmem:[%s196 + $0xa0] sm:$0xff]
        %v245 = vld [vmem:[%s196 + $0xa8] sm:$0xff]
        %v246 = vld [vmem:[%s196 + $0xb0] sm:$0xff]
        %v247 = vld [vmem:[%s196 + $0xb8] sm:$0xff]
        %v248 = vld [vmem:[%s196 + $0xc0] sm:$0xff]
        %v249 = vld [vmem:[%s196 + $0xc8] sm:$0xff]
        %v250 = vld [vmem:[%s196 + $0xd0] sm:$0xff]
        %v251 = vld [vmem:[%s196 + $0xd8] sm:$0xff]
        %v252 = vld [vmem:[%s196 + $0xe0] sm:$0xff]
        %v253 = vld [vmem:[%s196 + $0xe8] sm:$0xff]
        %v254 = vld [vmem:[%s196 + $0xf0] sm:$0xff]
        %v255 = vld [vmem:[%s196 + $0xf8] sm:$0xff]
        %v256 = vld [vmem:[#allocation5] sm:$0xff]
        %v257 = vld [vmem:[#allocation5 + $0x8] sm:$0xff]
        %v258 = vld [vmem:[#allocation5 + $0x10] sm:$0xff]
        %v259 = vld [vmem:[#allocation5 + $0x18] sm:$0xff]
        %v260 = vld [vmem:[#allocation5 + $0x20] sm:$0xff]
        %v261 = vld [vmem:[#allocation5 + $0x28] sm:$0xff]
        %v262 = vld [vmem:[#allocation5 + $0x30] sm:$0xff]
        %v263 = vld [vmem:[#allocation5 + $0x38] sm:$0xff]
        %v264 = vld [vmem:[#allocation5 + $0x40] sm:$0xff]
        %v265 = vld [vmem:[#allocation5 + $0x48] sm:$0xff]
        %v266 = vld [vmem:[#allocation5 + $0x50] sm:$0xff]
        %v267 = vld [vmem:[#allocation5 + $0x58] sm:$0xff]
        %v268 = vld [vmem:[#allocation5 + $0x60] sm:$0xff]
        %v269 = vld [vmem:[#allocation5 + $0x68] sm:$0xff]
        %v270 = vld [vmem:[#allocation5 + $0x70] sm:$0xff]
        %v271 = vld [vmem:[#allocation5 + $0x78] sm:$0xff]
        %v272 = vld [vmem:[#allocation5 + $0x80] sm:$0xff]
        %v273 = vld [vmem:[#allocation5 + $0x88] sm:$0xff]
        %v274 = vld [vmem:[#allocation5 + $0x90] sm:$0xff]
        %v275 = vld [vmem:[#allocation5 + $0x98] sm:$0xff]
        %v276 = vld [vmem:[#allocation5 + $0xa0] sm:$0xff]
        %v277 = vld [vmem:[#allocation5 + $0xa8] sm:$0xff]
        %v278 = vld [vmem:[#allocation5 + $0xb0] sm:$0xff]
        %v279 = vld [vmem:[#allocation5 + $0xb8] sm:$0xff]
        %v280 = vld [vmem:[#allocation5 + $0xc0] sm:$0xff]
        %v281 = vld [vmem:[#allocation5 + $0xc8] sm:$0xff]
        %v282 = vld [vmem:[#allocation5 + $0xd0] sm:$0xff]
        %v283 = vld [vmem:[#allocation5 + $0xd8] sm:$0xff]
        %v284 = vld [vmem:[#allocation5 + $0xe0] sm:$0xff]
        %v285 = vld [vmem:[#allocation5 + $0xe8] sm:$0xff]
        %v286 = vld [vmem:[#allocation5 + $0xf0] sm:$0xff]
        %v287 = vld [vmem:[#allocation5 + $0xf8] sm:$0xff]
        %v288 = vld [vmem:[#allocation5 + $0x100] sm:$0xff]
        %v289 = vld [vmem:[#allocation5 + $0x108] sm:$0xff]
        %v290 = vld [vmem:[#allocation5 + $0x110] sm:$0xff]
        %v291 = vld [vmem:[#allocation5 + $0x118] sm:$0xff]
        %v292 = vld [vmem:[#allocation5 + $0x120] sm:$0xff]
        %v293 = vld [vmem:[#allocation5 + $0x128] sm:$0xff]
        %v294 = vld [vmem:[#allocation5 + $0x130] sm:$0xff]
        %v295 = vld [vmem:[#allocation5 + $0x138] sm:$0xff]
        %v296 = vld [vmem:[#allocation5 + $0x140] sm:$0xff]
        %v297 = vld [vmem:[#allocation5 + $0x148] sm:$0xff]
        %v298 = vld [vmem:[#allocation5 + $0x150] sm:$0xff]
        %v299 = vld [vmem:[#allocation5 + $0x158] sm:$0xff]
        %v300 = vld [vmem:[#allocation5 + $0x160] sm:$0xff]
        %v301 = vld [vmem:[#allocation5 + $0x168] sm:$0xff]
        %v302 = vld [vmem:[#allocation5 + $0x170] sm:$0xff]
        %v303 = vld [vmem:[#allocation5 + $0x178] sm:$0xff]
        %v304 = vld [vmem:[#allocation5 + $0x180] sm:$0xff]
        %v305 = vld [vmem:[#allocation5 + $0x188] sm:$0xff]
        %v306 = vld [vmem:[#allocation5 + $0x190] sm:$0xff]
        %v307 = vld [vmem:[#allocation5 + $0x198] sm:$0xff]
        %v308 = vld [vmem:[#allocation5 + $0x1a0] sm:$0xff]
        %v309 = vld [vmem:[#allocation5 + $0x1a8] sm:$0xff]
        %v310 = vld [vmem:[#allocation5 + $0x1b0] sm:$0xff]
        %v311 = vld [vmem:[#allocation5 + $0x1b8] sm:$0xff]
        %v312 = vld [vmem:[#allocation5 + $0x1c0] sm:$0xff]
        %v313 = vld [vmem:[#allocation5 + $0x1c8] sm:$0xff]
        %v314 = vld [vmem:[#allocation5 + $0x1d0] sm:$0xff]
        %v315 = vld [vmem:[#allocation5 + $0x1d8] sm:$0xff]
        %v316 = vld [vmem:[#allocation5 + $0x1e0] sm:$0xff]
        %v317 = vld [vmem:[#allocation5 + $0x1e8] sm:$0xff]
        %v318 = vld [vmem:[#allocation5 + $0x1f0] sm:$0xff]
        %v319 = vld [vmem:[#allocation5 + $0x1f8] sm:$0xff]
        %v320 = vld [vmem:[#allocation5 + $0x200] sm:$0xff]
        %v321 = vld [vmem:[#allocation5 + $0x208] sm:$0xff]
        %v322 = vld [vmem:[#allocation5 + $0x210] sm:$0xff]
        %v323 = vld [vmem:[#allocation5 + $0x218] sm:$0xff]
        %v324 = vld [vmem:[#allocation5 + $0x220] sm:$0xff]
        %v325 = vld [vmem:[#allocation5 + $0x228] sm:$0xff]
        %v326 = vld [vmem:[#allocation5 + $0x230] sm:$0xff]
        %v327 = vld [vmem:[#allocation5 + $0x238] sm:$0xff]
        %v328 = vld [vmem:[#allocation5 + $0x240] sm:$0xff]
        %v329 = vld [vmem:[#allocation5 + $0x248] sm:$0xff]
        %v330 = vld [vmem:[#allocation5 + $0x250] sm:$0xff]
        %v331 = vld [vmem:[#allocation5 + $0x258] sm:$0xff]
        %v332 = vld [vmem:[#allocation5 + $0x260] sm:$0xff]
        %v333 = vld [vmem:[#allocation5 + $0x268] sm:$0xff]
        %v334 = vld [vmem:[#allocation5 + $0x270] sm:$0xff]
        %v335 = vld [vmem:[#allocation5 + $0x278] sm:$0xff]
        %v336 = vld [vmem:[#allocation5 + $0x280] sm:$0xff]
        %v337 = vld [vmem:[#allocation5 + $0x288] sm:$0xff]
        %v338 = vld [vmem:[#allocation5 + $0x290] sm:$0xff]
        %v339 = vld [vmem:[#allocation5 + $0x298] sm:$0xff]
        %v340 = vld [vmem:[#allocation5 + $0x2a0] sm:$0xff]
        %v341 = vld [vmem:[#allocation5 + $0x2a8] sm:$0xff]
        %v342 = vld [vmem:[#allocation5 + $0x2b0] sm:$0xff]
        %v343 = vld [vmem:[#allocation5 + $0x2b8] sm:$0xff]
        %v344 = vld [vmem:[#allocation5 + $0x2c0] sm:$0xff]
        %v345 = vld [vmem:[#allocation5 + $0x2c8] sm:$0xff]
        %v346 = vld [vmem:[#allocation5 + $0x2d0] sm:$0xff]
        %v347 = vld [vmem:[#allocation5 + $0x2d8] sm:$0xff]
        %v348 = vld [vmem:[#allocation5 + $0x2e0] sm:$0xff]
        %v349 = vld [vmem:[#allocation5 + $0x2e8] sm:$0xff]
        %v350 = vld [vmem:[#allocation5 + $0x2f0] sm:$0xff]
        %v351 = vld [vmem:[#allocation5 + $0x2f8] sm:$0xff]
        %v352 = vld [vmem:[#allocation5 + $0x300] sm:$0xff]
        %v353 = vld [vmem:[#allocation5 + $0x308] sm:$0xff]
        %v354 = vld [vmem:[#allocation5 + $0x310] sm:$0xff]
        %v355 = vld [vmem:[#allocation5 + $0x318] sm:$0xff]
        %v356 = vld [vmem:[#allocation5 + $0x320] sm:$0xff]
        %v357 = vld [vmem:[#allocation5 + $0x328] sm:$0xff]
        %v358 = vld [vmem:[#allocation5 + $0x330] sm:$0xff]
        %v359 = vld [vmem:[#allocation5 + $0x338] sm:$0xff]
        %v360 = vld [vmem:[#allocation5 + $0x340] sm:$0xff]
        %v361 = vld [vmem:[#allocation5 + $0x348] sm:$0xff]
        %v362 = vld [vmem:[#allocation5 + $0x350] sm:$0xff]
        %v363 = vld [vmem:[#allocation5 + $0x358] sm:$0xff]
        %v364 = vld [vmem:[#allocation5 + $0x360] sm:$0xff]
        %v365 = vld [vmem:[#allocation5 + $0x368] sm:$0xff]
        %v366 = vld [vmem:[#allocation5 + $0x370] sm:$0xff]
        %v367 = vld [vmem:[#allocation5 + $0x378] sm:$0xff]
        %v368 = vld [vmem:[#allocation5 + $0x380] sm:$0xff]
        %v369 = vld [vmem:[#allocation5 + $0x388] sm:$0xff]
        %v370 = vld [vmem:[#allocation5 + $0x390] sm:$0xff]
        %v371 = vld [vmem:[#allocation5 + $0x398] sm:$0xff]
        %v372 = vld [vmem:[#allocation5 + $0x3a0] sm:$0xff]
        %v373 = vld [vmem:[#allocation5 + $0x3a8] sm:$0xff]
        %v374 = vld [vmem:[#allocation5 + $0x3b0] sm:$0xff]
        %v375 = vld [vmem:[#allocation5 + $0x3b8] sm:$0xff]
        %v376 = vld [vmem:[#allocation5 + $0x3c0] sm:$0xff]
        %v377 = vld [vmem:[#allocation5 + $0x3c8] sm:$0xff]
        %v378 = vld [vmem:[#allocation5 + $0x3d0] sm:$0xff]
        %v379 = vld [vmem:[#allocation5 + $0x3d8] sm:$0xff]
        %v380 = vld [vmem:[#allocation5 + $0x3e0] sm:$0xff]
        %v381 = vld [vmem:[#allocation5 + $0x3e8] sm:$0xff]
        %v382 = vld [vmem:[#allocation5 + $0x3f0] sm:$0xff]
        %v383 = vld [vmem:[#allocation5 + $0x3f8] sm:$0xff]
        %384 = vmatprep.subr.mxu0 %v317
        %385 = vmatpush1.msra.mxu0 %v316
        %386 = vmatprep.subr.mxu0 %v313
        %387 = vmatpush1.msra.mxu0 %v312
        %388 = vmatprep.subr.mxu0 %v309
        %389 = vmatpush1.msra.mxu0 %v308
        %390 = vmatprep.subr.mxu0 %v305
        %391 = vmatpush1.msra.mxu0 %v304
        %392 = vmatprep.subr.mxu0 %v301
        %393 = vmatpush1.msra.mxu0 %v300
        %394 = vmatprep.subr.mxu0 %v297
        %395 = vmatpush1.msra.mxu0 %v296
        %396 = vmatprep.subr.mxu0 %v293
        %397 = vmatpush1.msra.mxu0 %v292
        %398 = vmatprep.subr.mxu0 %v289
        %399 = vmatpush1.msra.mxu0 %v288
        %400 = vmatprep.subr.mxu0 %v285
        %401 = vmatpush1.msra.mxu0 %v284
        %402 = vmatprep.subr.mxu0 %v281
        %403 = vmatpush1.msra.mxu0 %v280
        %404 = vmatprep.subr.mxu0 %v277
        %405 = vmatpush1.msra.mxu0 %v276
        %406 = vmatprep.subr.mxu0 %v273
        %407 = vmatpush1.msra.mxu0 %v272
        %408 = vmatprep.subr.mxu0 %v269
        %409 = vmatpush1.msra.mxu0 %v268
        %410 = vmatprep.subr.mxu0 %v265
        %411 = vmatpush1.msra.mxu0 %v264
        %412 = vmatprep.subr.mxu0 %v261
        %413 = vmatpush1.msra.mxu0 %v260
        %414 = vmatprep.subr.mxu0 %v257
        %415 = vmatpush1.msra.mxu0 %v256
        %416 = vmatprep.subr.mxu0 %v381
        %417 = vmatpush2.msra.mxu0 %v380
        %418 = vmatprep.subr.mxu0 %v377
        %419 = vmatpush2.msra.mxu0 %v376
        %420 = vmatprep.subr.mxu0 %v373
        %421 = vmatpush2.msra.mxu0 %v372
        %422 = vmatprep.subr.mxu0 %v369
        %423 = vmatpush2.msra.mxu0 %v368
        %424 = vmatprep.subr.mxu0 %v365
        %425 = vmatpush2.msra.mxu0 %v364
        %426 = vmatprep.subr.mxu0 %v361
        %427 = vmatpush2.msra.mxu0 %v360
        %428 = vmatprep.subr.mxu0 %v357
        %429 = vmatpush2.msra.mxu0 %v356
        %430 = vmatprep.subr.mxu0 %v353
        %431 = vmatpush2.msra.mxu0 %v352
        %432 = vmatprep.subr.mxu0 %v349
        %433 = vmatpush2.msra.mxu0 %v348
        %434 = vmatprep.subr.mxu0 %v345
        %435 = vmatpush2.msra.mxu0 %v344
        %436 = vmatprep.subr.mxu0 %v341
        %437 = vmatpush2.msra.mxu0 %v340
        %438 = vmatprep.subr.mxu0 %v337
        %439 = vmatpush2.msra.mxu0 %v336
        %440 = vmatprep.subr.mxu0 %v333
        %441 = vmatpush2.msra.mxu0 %v332
        %442 = vmatprep.subr.mxu0 %v329
        %443 = vmatpush2.msra.mxu0 %v328
        %444 = vmatprep.subr.mxu0 %v325
        %445 = vmatpush2.msra.mxu0 %v324
        %446 = vmatprep.subr.mxu0 %v321
        %447 = vmatpush2.msra.mxu0 %v320
        %448 = vmatprep.mubr.f32.mxu0 %v225
        %449 = vmatmul.mubr.f32.gmra.mxu0 %v224
        %v450 = vpop.f32.mrf.mxu0
        %v451 = vadd.f32 0.0, %v450
        %v452 = vpop.f32.mrf.mxu0
        %v453 = vadd.f32 0.0, %v452
        %454 = vmatprep.mubr.f32.mxu0 %v227
        %455 = vmatmul.mubr.f32.gmra.mxu0 %v226
        %v456 = vpop.f32.mrf.mxu0
        %v457 = vadd.f32 0.0, %v456
        %v458 = vpop.f32.mrf.mxu0
        %v459 = vadd.f32 0.0, %v458
        %460 = vmatprep.mubr.f32.mxu0 %v229
        %461 = vmatmul.mubr.f32.gmra.mxu0 %v228
        %v462 = vpop.f32.mrf.mxu0
        %v463 = vadd.f32 0.0, %v462
        %v464 = vpop.f32.mrf.mxu0
        %v465 = vadd.f32 0.0, %v464
        %466 = vmatprep.mubr.f32.mxu0 %v231
        %467 = vmatmul.mubr.f32.gmra.mxu0 %v230
        %v468 = vpop.f32.mrf.mxu0
        %v469 = vadd.f32 0.0, %v468
        %v470 = vpop.f32.mrf.mxu0
        %v471 = vadd.f32 0.0, %v470
        %472 = vmatprep.mubr.f32.mxu0 %v233
        %473 = vmatmul.mubr.f32.gmra.mxu0 %v232
        %v474 = vpop.f32.mrf.mxu0
        %v475 = vadd.f32 0.0, %v474
        %v476 = vpop.f32.mrf.mxu0
        %v477 = vadd.f32 0.0, %v476
        %478 = vmatprep.mubr.f32.mxu0 %v235
        %479 = vmatmul.mubr.f32.gmra.mxu0 %v234
        %v480 = vpop.f32.mrf.mxu0
        %v481 = vadd.f32 0.0, %v480
        %v482 = vpop.f32.mrf.mxu0
        %v483 = vadd.f32 0.0, %v482
        %484 = vmatprep.mubr.f32.mxu0 %v237
        %485 = vmatmul.mubr.f32.gmra.mxu0 %v236
        %v486 = vpop.f32.mrf.mxu0
        %v487 = vadd.f32 0.0, %v486
        %v488 = vpop.f32.mrf.mxu0
        %v489 = vadd.f32 0.0, %v488
        %490 = vmatprep.mubr.f32.mxu0 %v239
        %491 = vmatmul.mubr.f32.gmra.mxu0 %v238
        %v492 = vpop.f32.mrf.mxu0
        %v493 = vadd.f32 0.0, %v492
        %v494 = vpop.f32.mrf.mxu0
        %v495 = vadd.f32 0.0, %v494
        %496 = vmatprep.mubr.f32.mxu0 %v241
        %497 = vmatmul.mubr.f32.gmra.mxu0 %v240
        %v498 = vpop.f32.mrf.mxu0
        %v499 = vadd.f32 0.0, %v498
        %v500 = vpop.f32.mrf.mxu0
        %v501 = vadd.f32 0.0, %v500
        %502 = vmatprep.mubr.f32.mxu0 %v243
        %503 = vmatmul.mubr.f32.gmra.mxu0 %v242
        %v504 = vpop.f32.mrf.mxu0
        %v505 = vadd.f32 0.0, %v504
        %v506 = vpop.f32.mrf.mxu0
        %v507 = vadd.f32 0.0, %v506
        %508 = vmatprep.mubr.f32.mxu0 %v245
        %509 = vmatmul.mubr.f32.gmra.mxu0 %v244
        %v510 = vpop.f32.mrf.mxu0
        %v511 = vadd.f32 0.0, %v510
        %v512 = vpop.f32.mrf.mxu0
        %v513 = vadd.f32 0.0, %v512
        %514 = vmatprep.mubr.f32.mxu0 %v247
        %515 = vmatmul.mubr.f32.gmra.mxu0 %v246
        %v516 = vpop.f32.mrf.mxu0
        %v517 = vadd.f32 0.0, %v516
        %v518 = vpop.f32.mrf.mxu0
        %v519 = vadd.f32 0.0, %v518
        %520 = vmatprep.mubr.f32.mxu0 %v249
        %521 = vmatmul.mubr.f32.gmra.mxu0 %v248
        %v522 = vpop.f32.mrf.mxu0
        %v523 = vadd.f32 0.0, %v522
        %v524 = vpop.f32.mrf.mxu0
        %v525 = vadd.f32 0.0, %v524
        %526 = vmatprep.mubr.f32.mxu0 %v251
        %527 = vmatmul.mubr.f32.gmra.mxu0 %v250
        %v528 = vpop.f32.mrf.mxu0
        %v529 = vadd.f32 0.0, %v528
        %v530 = vpop.f32.mrf.mxu0
        %v531 = vadd.f32 0.0, %v530
        %532 = vmatprep.mubr.f32.mxu0 %v253
        %533 = vmatmul.mubr.f32.gmra.mxu0 %v252
        %v534 = vpop.f32.mrf.mxu0
        %v535 = vadd.f32 0.0, %v534
        %v536 = vpop.f32.mrf.mxu0
        %v537 = vadd.f32 0.0, %v536
        %538 = vmatprep.mubr.f32.mxu0 %v255
        %539 = vmatmul.mubr.f32.gmra.mxu0 %v254
        %v540 = vpop.f32.mrf.mxu0
        %v541 = vadd.f32 0.0, %v540
        %v542 = vpop.f32.mrf.mxu0
        %v543 = vadd.f32 0.0, %v542
        %544 = vdwg.mxu0
        %545 = vmatprep.subr.mxu0 %v319
        %546 = vmatpush1.msra.mxu0 %v318
        %547 = vmatprep.subr.mxu0 %v315
        %548 = vmatpush1.msra.mxu0 %v314
        %549 = vmatprep.subr.mxu0 %v311
        %550 = vmatpush1.msra.mxu0 %v310
        %551 = vmatprep.subr.mxu0 %v307
        %552 = vmatpush1.msra.mxu0 %v306
        %553 = vmatprep.subr.mxu0 %v303
        %554 = vmatpush1.msra.mxu0 %v302
        %555 = vmatprep.subr.mxu0 %v299
        %556 = vmatpush1.msra.mxu0 %v298
        %557 = vmatprep.subr.mxu0 %v295
        %558 = vmatpush1.msra.mxu0 %v294
        %559 = vmatprep.subr.mxu0 %v291
        %560 = vmatpush1.msra.mxu0 %v290
        %561 = vmatprep.subr.mxu0 %v287
        %562 = vmatpush1.msra.mxu0 %v286
        %563 = vmatprep.subr.mxu0 %v283
        %564 = vmatpush1.msra.mxu0 %v282
        %565 = vmatprep.subr.mxu0 %v279
        %566 = vmatpush1.msra.mxu0 %v278
        %567 = vmatprep.subr.mxu0 %v275
        %568 = vmatpush1.msra.mxu0 %v274
        %569 = vmatprep.subr.mxu0 %v271
        %570 = vmatpush1.msra.mxu0 %v270
        %571 = vmatprep.subr.mxu0 %v267
        %572 = vmatpush1.msra.mxu0 %v266
        %573 = vmatprep.subr.mxu0 %v263
        %574 = vmatpush1.msra.mxu0 %v262
        %575 = vmatprep.subr.mxu0 %v259
        %576 = vmatpush1.msra.mxu0 %v258
        %577 = vmatprep.subr.mxu0 %v383
        %578 = vmatpush2.msra.mxu0 %v382
        %579 = vmatprep.subr.mxu0 %v379
        %580 = vmatpush2.msra.mxu0 %v378
        %581 = vmatprep.subr.mxu0 %v375
        %582 = vmatpush2.msra.mxu0 %v374
        %583 = vmatprep.subr.mxu0 %v371
        %584 = vmatpush2.msra.mxu0 %v370
        %585 = vmatprep.subr.mxu0 %v367
        %586 = vmatpush2.msra.mxu0 %v366
        %587 = vmatprep.subr.mxu0 %v363
        %588 = vmatpush2.msra.mxu0 %v362
        %589 = vmatprep.subr.mxu0 %v359
        %590 = vmatpush2.msra.mxu0 %v358
        %591 = vmatprep.subr.mxu0 %v355
        %592 = vmatpush2.msra.mxu0 %v354
        %593 = vmatprep.subr.mxu0 %v351
        %594 = vmatpush2.msra.mxu0 %v350
        %595 = vmatprep.subr.mxu0 %v347
        %596 = vmatpush2.msra.mxu0 %v346
        %597 = vmatprep.subr.mxu0 %v343
        %598 = vmatpush2.msra.mxu0 %v342
        %599 = vmatprep.subr.mxu0 %v339
        %600 = vmatpush2.msra.mxu0 %v338
        %601 = vmatprep.subr.mxu0 %v335
        %602 = vmatpush2.msra.mxu0 %v334
        %603 = vmatprep.subr.mxu0 %v331
        %604 = vmatpush2.msra.mxu0 %v330
        %605 = vmatprep.subr.mxu0 %v327
        %606 = vmatpush2.msra.mxu0 %v326
        %607 = vmatprep.subr.mxu0 %v323
        %608 = vmatpush2.msra.mxu0 %v322
        %609 = vmatprep.mubr.f32.mxu0 %v225
        %610 = vmatmul.mubr.f32.gmra.mxu0 %v224
        %v611 = vpop.f32.mrf.mxu0
        %v612 = vadd.f32 0.0, %v611
        %v613 = vpop.f32.mrf.mxu0
        %v614 = vadd.f32 0.0, %v613
        %615 = vmatprep.mubr.f32.mxu0 %v227
        %616 = vmatmul.mubr.f32.gmra.mxu0 %v226
        %v617 = vpop.f32.mrf.mxu0
        %v618 = vadd.f32 0.0, %v617
        %v619 = vpop.f32.mrf.mxu0
        %v620 = vadd.f32 0.0, %v619
        %621 = vmatprep.mubr.f32.mxu0 %v229
        %622 = vmatmul.mubr.f32.gmra.mxu0 %v228
        %v623 = vpop.f32.mrf.mxu0
        %v624 = vadd.f32 0.0, %v623
        %v625 = vpop.f32.mrf.mxu0
        %v626 = vadd.f32 0.0, %v625
        %627 = vmatprep.mubr.f32.mxu0 %v231
        %628 = vmatmul.mubr.f32.gmra.mxu0 %v230
        %v629 = vpop.f32.mrf.mxu0
        %v630 = vadd.f32 0.0, %v629
        %v631 = vpop.f32.mrf.mxu0
        %v632 = vadd.f32 0.0, %v631
        %633 = vmatprep.mubr.f32.mxu0 %v233
        %634 = vmatmul.mubr.f32.gmra.mxu0 %v232
        %v635 = vpop.f32.mrf.mxu0
        %v636 = vadd.f32 0.0, %v635
        %v637 = vpop.f32.mrf.mxu0
        %v638 = vadd.f32 0.0, %v637
        %639 = vmatprep.mubr.f32.mxu0 %v235
        %640 = vmatmul.mubr.f32.gmra.mxu0 %v234
        %v641 = vpop.f32.mrf.mxu0
        %v642 = vadd.f32 0.0, %v641
        %v643 = vpop.f32.mrf.mxu0
        %v644 = vadd.f32 0.0, %v643
        %645 = vmatprep.mubr.f32.mxu0 %v237
        %646 = vmatmul.mubr.f32.gmra.mxu0 %v236
        %v647 = vpop.f32.mrf.mxu0
        %v648 = vadd.f32 0.0, %v647
        %v649 = vpop.f32.mrf.mxu0
        %v650 = vadd.f32 0.0, %v649
        %651 = vmatprep.mubr.f32.mxu0 %v239
        %652 = vmatmul.mubr.f32.gmra.mxu0 %v238
        %v653 = vpop.f32.mrf.mxu0
        %v654 = vadd.f32 0.0, %v653
        %v655 = vpop.f32.mrf.mxu0
        %v656 = vadd.f32 0.0, %v655
        %657 = vmatprep.mubr.f32.mxu0 %v241
        %658 = vmatmul.mubr.f32.gmra.mxu0 %v240
        %v659 = vpop.f32.mrf.mxu0
        %v660 = vadd.f32 0.0, %v659
        %v661 = vpop.f32.mrf.mxu0
        %v662 = vadd.f32 0.0, %v661
        %663 = vmatprep.mubr.f32.mxu0 %v243
        %664 = vmatmul.mubr.f32.gmra.mxu0 %v242
        %v665 = vpop.f32.mrf.mxu0
        %v666 = vadd.f32 0.0, %v665
        %v667 = vpop.f32.mrf.mxu0
        %v668 = vadd.f32 0.0, %v667
        %669 = vmatprep.mubr.f32.mxu0 %v245
        %670 = vmatmul.mubr.f32.gmra.mxu0 %v244
        %v671 = vpop.f32.mrf.mxu0
        %v672 = vadd.f32 0.0, %v671
        %v673 = vpop.f32.mrf.mxu0
        %v674 = vadd.f32 0.0, %v673
        %675 = vmatprep.mubr.f32.mxu0 %v247
        %676 = vmatmul.mubr.f32.gmra.mxu0 %v246
        %v677 = vpop.f32.mrf.mxu0
        %v678 = vadd.f32 0.0, %v677
        %v679 = vpop.f32.mrf.mxu0
        %v680 = vadd.f32 0.0, %v679
        %681 = vmatprep.mubr.f32.mxu0 %v249
        %682 = vmatmul.mubr.f32.gmra.mxu0 %v248
        %v683 = vpop.f32.mrf.mxu0
        %v684 = vadd.f32 0.0, %v683
        %v685 = vpop.f32.mrf.mxu0
        %v686 = vadd.f32 0.0, %v685
        %687 = vmatprep.mubr.f32.mxu0 %v251
        %688 = vmatmul.mubr.f32.gmra.mxu0 %v250
        %v689 = vpop.f32.mrf.mxu0
        %v690 = vadd.f32 0.0, %v689
        %v691 = vpop.f32.mrf.mxu0
        %v692 = vadd.f32 0.0, %v691
        %693 = vmatprep.mubr.f32.mxu0 %v253
        %694 = vmatmul.mubr.f32.gmra.mxu0 %v252
        %v695 = vpop.f32.mrf.mxu0
        %v696 = vadd.f32 0.0, %v695
        %v697 = vpop.f32.mrf.mxu0
        %v698 = vadd.f32 0.0, %v697
        %699 = vmatprep.mubr.f32.mxu0 %v255
        %700 = vmatmul.mubr.f32.gmra.mxu0 %v254
        %v701 = vpop.f32.mrf.mxu0
        %v702 = vadd.f32 0.0, %v701
        %v703 = vpop.f32.mrf.mxu0
        %v704 = vadd.f32 0.0, %v703
        %705 = vdwg.mxu0
        %v706 = vmul.f32 %v451, %v451
        %v707 = vmul.f32 %v453, %v453
        %v708 = vmul.f32 %v457, %v457
        %v709 = vmul.f32 %v459, %v459
        %v710 = vmul.f32 %v463, %v463
        %v711 = vmul.f32 %v465, %v465
        %v712 = vmul.f32 %v469, %v469
        %v713 = vmul.f32 %v471, %v471
        %v714 = vmul.f32 %v475, %v475
        %v715 = vmul.f32 %v477, %v477
        %v716 = vmul.f32 %v481, %v481
        %v717 = vmul.f32 %v483, %v483
        %v718 = vmul.f32 %v487, %v487
        %v719 = vmul.f32 %v489, %v489
        %v720 = vmul.f32 %v493, %v493
        %v721 = vmul.f32 %v495, %v495
        %v722 = vmul.f32 %v499, %v499
        %v723 = vmul.f32 %v501, %v501
        %v724 = vmul.f32 %v505, %v505
        %v725 = vmul.f32 %v507, %v507
        %v726 = vmul.f32 %v511, %v511
        %v727 = vmul.f32 %v513, %v513
        %v728 = vmul.f32 %v517, %v517
        %v729 = vmul.f32 %v519, %v519
        %v730 = vmul.f32 %v523, %v523
        %v731 = vmul.f32 %v525, %v525
        %v732 = vmul.f32 %v529, %v529
        %v733 = vmul.f32 %v531, %v531
        %v734 = vmul.f32 %v535, %v535
        %v735 = vmul.f32 %v537, %v537
        %v736 = vmul.f32 %v541, %v541
        %v737 = vmul.f32 %v543, %v543
        %v738 = vmul.f32 %v612, %v612
        %v739 = vmul.f32 %v614, %v614
        %v740 = vmul.f32 %v618, %v618
        %v741 = vmul.f32 %v620, %v620
        %v742 = vmul.f32 %v624, %v624
        %v743 = vmul.f32 %v626, %v626
        %v744 = vmul.f32 %v630, %v630
        %v745 = vmul.f32 %v632, %v632
        %v746 = vmul.f32 %v636, %v636
        %v747 = vmul.f32 %v638, %v638
        %v748 = vmul.f32 %v642, %v642
        %v749 = vmul.f32 %v644, %v644
        %v750 = vmul.f32 %v648, %v648
        %v751 = vmul.f32 %v650, %v650
        %v752 = vmul.f32 %v654, %v654
        %v753 = vmul.f32 %v656, %v656
        %v754 = vmul.f32 %v660, %v660
        %v755 = vmul.f32 %v662, %v662
        %v756 = vmul.f32 %v666, %v666
        %v757 = vmul.f32 %v668, %v668
        %v758 = vmul.f32 %v672, %v672
        %v759 = vmul.f32 %v674, %v674
        %v760 = vmul.f32 %v678, %v678
        %v761 = vmul.f32 %v680, %v680
        %v762 = vmul.f32 %v684, %v684
        %v763 = vmul.f32 %v686, %v686
        %v764 = vmul.f32 %v690, %v690
        %v765 = vmul.f32 %v692, %v692
        %v766 = vmul.f32 %v696, %v696
        %v767 = vmul.f32 %v698, %v698
        %v768 = vmul.f32 %v702, %v702
        %v769 = vmul.f32 %v704, %v704
        %v770 = vadd.f32 %v706, %v738
        %v771 = vadd.f32 %v707, %v739
        %v772 = vadd.f32 %v708, %v740
        %v773 = vadd.f32 %v709, %v741
        %v774 = vadd.f32 %v710, %v742
        %v775 = vadd.f32 %v711, %v743
        %v776 = vadd.f32 %v712, %v744
        %v777 = vadd.f32 %v713, %v745
        %v778 = vadd.f32 %v714, %v746
        %v779 = vadd.f32 %v715, %v747
        %v780 = vadd.f32 %v716, %v748
        %v781 = vadd.f32 %v717, %v749
        %v782 = vadd.f32 %v718, %v750
        %v783 = vadd.f32 %v719, %v751
        %v784 = vadd.f32 %v720, %v752
        %v785 = vadd.f32 %v721, %v753
        %v786 = vadd.f32 %v722, %v754
        %v787 = vadd.f32 %v723, %v755
        %v788 = vadd.f32 %v724, %v756
        %v789 = vadd.f32 %v725, %v757
        %v790 = vadd.f32 %v726, %v758
        %v791 = vadd.f32 %v727, %v759
        %v792 = vadd.f32 %v728, %v760
        %v793 = vadd.f32 %v729, %v761
        %v794 = vadd.f32 %v730, %v762
        %v795 = vadd.f32 %v731, %v763
        %v796 = vadd.f32 %v732, %v764
        %v797 = vadd.f32 %v733, %v765
        %v798 = vadd.f32 %v734, %v766
        %v799 = vadd.f32 %v735, %v767
        %v800 = vadd.f32 %v736, %v768
        %v801 = vadd.f32 %v737, %v769
        %v802 = vld [vmem:[%s2] sm:$0xff]
        %v803 = vld [vmem:[%s2 + $0x8] sm:$0xff]
        %v804 = vld [vmem:[%s2 + $0x10] sm:$0xff]
        %v805 = vld [vmem:[%s2 + $0x18] sm:$0xff]
        %v806 = vld [vmem:[%s2 + $0x20] sm:$0xff]
        %v807 = vld [vmem:[%s2 + $0x28] sm:$0xff]
        %v808 = vld [vmem:[%s2 + $0x30] sm:$0xff]
        %v809 = vld [vmem:[%s2 + $0x38] sm:$0xff]
        %v810 = vld [vmem:[%s2 + $0x40] sm:$0xff]
        %v811 = vld [vmem:[%s2 + $0x48] sm:$0xff]
        %v812 = vld [vmem:[%s2 + $0x50] sm:$0xff]
        %v813 = vld [vmem:[%s2 + $0x58] sm:$0xff]
        %v814 = vld [vmem:[%s2 + $0x60] sm:$0xff]
        %v815 = vld [vmem:[%s2 + $0x68] sm:$0xff]
        %v816 = vld [vmem:[%s2 + $0x70] sm:$0xff]
        %v817 = vld [vmem:[%s2 + $0x78] sm:$0xff]
        %v818 = vld [vmem:[%s2 + $0x80] sm:$0xff]
        %v819 = vld [vmem:[%s2 + $0x88] sm:$0xff]
        %v820 = vld [vmem:[%s2 + $0x90] sm:$0xff]
        %v821 = vld [vmem:[%s2 + $0x98] sm:$0xff]
        %v822 = vld [vmem:[%s2 + $0xa0] sm:$0xff]
        %v823 = vld [vmem:[%s2 + $0xa8] sm:$0xff]
        %v824 = vld [vmem:[%s2 + $0xb0] sm:$0xff]
        %v825 = vld [vmem:[%s2 + $0xb8] sm:$0xff]
        %v826 = vld [vmem:[%s2 + $0xc0] sm:$0xff]
        %v827 = vld [vmem:[%s2 + $0xc8] sm:$0xff]
        %v828 = vld [vmem:[%s2 + $0xd0] sm:$0xff]
        %v829 = vld [vmem:[%s2 + $0xd8] sm:$0xff]
        %v830 = vld [vmem:[%s2 + $0xe0] sm:$0xff]
        %v831 = vld [vmem:[%s2 + $0xe8] sm:$0xff]
        %v832 = vld [vmem:[%s2 + $0xf0] sm:$0xff]
        %v833 = vld [vmem:[%s2 + $0xf8] sm:$0xff]
        %834 = vmatprep.subr.mxu0 0.0
        %835 = vmatpush1.msra.mxu0 %v817
        %836 = vmatprep.subr.mxu0 0.0
        %837 = vmatpush1.msra.mxu0 %v816
        %838 = vmatprep.subr.mxu0 0.0
        %839 = vmatpush1.msra.mxu0 %v815
        %840 = vmatprep.subr.mxu0 0.0
        %841 = vmatpush1.msra.mxu0 %v814
        %842 = vmatprep.subr.mxu0 0.0
        %843 = vmatpush1.msra.mxu0 %v813
        %844 = vmatprep.subr.mxu0 0.0
        %845 = vmatpush1.msra.mxu0 %v812
        %846 = vmatprep.subr.mxu0 0.0
        %847 = vmatpush1.msra.mxu0 %v811
        %848 = vmatprep.subr.mxu0 0.0
        %849 = vmatpush1.msra.mxu0 %v810
        %850 = vmatprep.subr.mxu0 0.0
        %851 = vmatpush1.msra.mxu0 %v809
        %852 = vmatprep.subr.mxu0 0.0
        %853 = vmatpush1.msra.mxu0 %v808
        %854 = vmatprep.subr.mxu0 0.0
        %855 = vmatpush1.msra.mxu0 %v807
        %856 = vmatprep.subr.mxu0 0.0
        %857 = vmatpush1.msra.mxu0 %v806
        %858 = vmatprep.subr.mxu0 0.0
        %859 = vmatpush1.msra.mxu0 %v805
        %860 = vmatprep.subr.mxu0 0.0
        %861 = vmatpush1.msra.mxu0 %v804
        %862 = vmatprep.subr.mxu0 0.0
        %863 = vmatpush1.msra.mxu0 %v803
        %864 = vmatprep.subr.mxu0 0.0
        %865 = vmatpush1.msra.mxu0 %v802
        %866 = vmatprep.subr.mxu0 0.0
        %867 = vmatpush2.msra.mxu0 %v833
        %868 = vmatprep.subr.mxu0 0.0
        %869 = vmatpush2.msra.mxu0 %v832
        %870 = vmatprep.subr.mxu0 0.0
        %871 = vmatpush2.msra.mxu0 %v831
        %872 = vmatprep.subr.mxu0 0.0
        %873 = vmatpush2.msra.mxu0 %v830
        %874 = vmatprep.subr.mxu0 0.0
        %875 = vmatpush2.msra.mxu0 %v829
        %876 = vmatprep.subr.mxu0 0.0
        %877 = vmatpush2.msra.mxu0 %v828
        %878 = vmatprep.subr.mxu0 0.0
        %879 = vmatpush2.msra.mxu0 %v827
        %880 = vmatprep.subr.mxu0 0.0
        %881 = vmatpush2.msra.mxu0 %v826
        %882 = vmatprep.subr.mxu0 0.0
        %883 = vmatpush2.msra.mxu0 %v825
        %884 = vmatprep.subr.mxu0 0.0
        %885 = vmatpush2.msra.mxu0 %v824
        %886 = vmatprep.subr.mxu0 0.0
        %887 = vmatpush2.msra.mxu0 %v823
        %888 = vmatprep.subr.mxu0 0.0
        %889 = vmatpush2.msra.mxu0 %v822
        %890 = vmatprep.subr.mxu0 0.0
        %891 = vmatpush2.msra.mxu0 %v821
        %892 = vmatprep.subr.mxu0 0.0
        %893 = vmatpush2.msra.mxu0 %v820
        %894 = vmatprep.subr.mxu0 0.0
        %895 = vmatpush2.msra.mxu0 %v819
        %896 = vmatprep.subr.mxu0 0.0
        %897 = vmatpush2.msra.mxu0 %v818
        %898 = vmatprep.mubr.f32.mxu0 %v771
        %899 = vmatmul.mubr.f32.gmra.mxu0 %v770
        %v900 = vpop.f32.mrf.mxu0
        %v901 = vadd.f32 0.0, %v900
        %v902 = vpop.f32.mrf.mxu0
        %903 = vmatprep.mubr.f32.mxu0 %v773
        %904 = vmatmul.mubr.f32.gmra.mxu0 %v772
        %v905 = vpop.f32.mrf.mxu0
        %v906 = vadd.f32 0.0, %v905
        %v907 = vpop.f32.mrf.mxu0
        %908 = vmatprep.mubr.f32.mxu0 %v775
        %909 = vmatmul.mubr.f32.gmra.mxu0 %v774
        %v910 = vpop.f32.mrf.mxu0
        %v911 = vadd.f32 0.0, %v910
        %v912 = vpop.f32.mrf.mxu0
        %913 = vmatprep.mubr.f32.mxu0 %v777
        %914 = vmatmul.mubr.f32.gmra.mxu0 %v776
        %v915 = vpop.f32.mrf.mxu0
        %v916 = vadd.f32 0.0, %v915
        %v917 = vpop.f32.mrf.mxu0
        %918 = vmatprep.mubr.f32.mxu0 %v779
        %919 = vmatmul.mubr.f32.gmra.mxu0 %v778
        %v920 = vpop.f32.mrf.mxu0
        %v921 = vadd.f32 0.0, %v920
        %v922 = vpop.f32.mrf.mxu0
        %923 = vmatprep.mubr.f32.mxu0 %v781
        %924 = vmatmul.mubr.f32.gmra.mxu0 %v780
        %v925 = vpop.f32.mrf.mxu0
        %v926 = vadd.f32 0.0, %v925
        %v927 = vpop.f32.mrf.mxu0
        %928 = vmatprep.mubr.f32.mxu0 %v783
        %929 = vmatmul.mubr.f32.gmra.mxu0 %v782
        %v930 = vpop.f32.mrf.mxu0
        %v931 = vadd.f32 0.0, %v930
        %v932 = vpop.f32.mrf.mxu0
        %933 = vmatprep.mubr.f32.mxu0 %v785
        %934 = vmatmul.mubr.f32.gmra.mxu0 %v784
        %v935 = vpop.f32.mrf.mxu0
        %v936 = vadd.f32 0.0, %v935
        %v937 = vpop.f32.mrf.mxu0
        %938 = vmatprep.mubr.f32.mxu0 %v787
        %939 = vmatmul.mubr.f32.gmra.mxu0 %v786
        %v940 = vpop.f32.mrf.mxu0
        %v941 = vadd.f32 0.0, %v940
        %v942 = vpop.f32.mrf.mxu0
        %943 = vmatprep.mubr.f32.mxu0 %v789
        %944 = vmatmul.mubr.f32.gmra.mxu0 %v788
        %v945 = vpop.f32.mrf.mxu0
        %v946 = vadd.f32 0.0, %v945
        %v947 = vpop.f32.mrf.mxu0
        %948 = vmatprep.mubr.f32.mxu0 %v791
        %949 = vmatmul.mubr.f32.gmra.mxu0 %v790
        %v950 = vpop.f32.mrf.mxu0
        %v951 = vadd.f32 0.0, %v950
        %v952 = vpop.f32.mrf.mxu0
        %953 = vmatprep.mubr.f32.mxu0 %v793
        %954 = vmatmul.mubr.f32.gmra.mxu0 %v792
        %v955 = vpop.f32.mrf.mxu0
        %v956 = vadd.f32 0.0, %v955
        %v957 = vpop.f32.mrf.mxu0
        %958 = vmatprep.mubr.f32.mxu0 %v795
        %959 = vmatmul.mubr.f32.gmra.mxu0 %v794
        %v960 = vpop.f32.mrf.mxu0
        %v961 = vadd.f32 0.0, %v960
        %v962 = vpop.f32.mrf.mxu0
        %963 = vmatprep.mubr.f32.mxu0 %v797
        %964 = vmatmul.mubr.f32.gmra.mxu0 %v796
        %v965 = vpop.f32.mrf.mxu0
        %v966 = vadd.f32 0.0, %v965
        %v967 = vpop.f32.mrf.mxu0
        %968 = vmatprep.mubr.f32.mxu0 %v799
        %969 = vmatmul.mubr.f32.gmra.mxu0 %v798
        %v970 = vpop.f32.mrf.mxu0
        %v971 = vadd.f32 0.0, %v970
        %v972 = vpop.f32.mrf.mxu0
        %973 = vmatprep.mubr.f32.mxu0 %v801
        %974 = vmatmul.mubr.f32.gmra.mxu0 %v800
        %v975 = vpop.f32.mrf.mxu0
        %v976 = vadd.f32 0.0, %v975
        %v977 = vpop.f32.mrf.mxu0
        %978 = vdwg.mxu0
        %979 = vxpose.xlu0.b32.start [1/16] %v901, 128
        %980 = vxpose.xlu0.b32.cont [2/16] %v906, 128
        %981 = vxpose.xlu0.b32.cont [3/16] %v911, 128
        %982 = vxpose.xlu0.b32.cont [4/16] %v916, 128
        %983 = vxpose.xlu0.b32.cont [5/16] %v921, 128
        %984 = vxpose.xlu0.b32.cont [6/16] %v926, 128
        %985 = vxpose.xlu0.b32.cont [7/16] %v931, 128
        %986 = vxpose.xlu0.b32.cont [8/16] %v936, 128
        %987 = vxpose.xlu0.b32.cont [9/16] %v941, 128
        %988 = vxpose.xlu0.b32.cont [10/16] %v946, 128
        %989 = vxpose.xlu0.b32.cont [11/16] %v951, 128
        %990 = vxpose.xlu0.b32.cont [12/16] %v956, 128
        %991 = vxpose.xlu0.b32.cont [13/16] %v961, 128
        %992 = vxpose.xlu0.b32.cont [14/16] %v966, 128
        %993 = vxpose.xlu0.b32.cont [15/16] %v971, 128
        %994 = vxpose.xlu0.b32.end [16/16] %v976, 128
        %v995 = vpop.trf.xlu0
        %v996 = vpop.trf.xlu0
        %v997 = vpop.trf.xlu0
        %v998 = vpop.trf.xlu0
        %v999 = vpop.trf.xlu0
        %v1000 = vpop.trf.xlu0
        %v1001 = vpop.trf.xlu0
        %v1002 = vpop.trf.xlu0
        %v1003 = vpop.trf.xlu0
        %v1004 = vpop.trf.xlu0
        %v1005 = vpop.trf.xlu0
        %v1006 = vpop.trf.xlu0
        %v1007 = vpop.trf.xlu0
        %v1008 = vpop.trf.xlu0
        %v1009 = vpop.trf.xlu0
        %v1010 = vpop.trf.xlu0
        %1011 = vst [vmem:[%s222] sm:$0xff] %v995
        %1012 = vst [vmem:[%s222 + $0x8] sm:$0xff] %v996
        %1013 = vst [vmem:[%s222 + $0x10] sm:$0xff] %v997
        %1014 = vst [vmem:[%s222 + $0x18] sm:$0xff] %v998
        %s1015 = sand.u32 %s113, 1
        %s1016 = scalar_lea.sflag [#allocation4], %s1015
        %s1017 = sand.u32 %s113, 1
        %s1018 = smul.addr %s1017, 32
        %s1019 = scalar_lea.vmem [#allocation7], %s1018
        // Predicated region
        $region41: #{tpu_custom_call.1} parent=31 // pred_check
          %p1020 = pneg %p123
        $region42: #{tpu_custom_call.1} parent=31 // pred_check_branch
          %1022 = sbr.rel (%p1020) target = $region44
        $region43: #{tpu_custom_call.1} parent=31 // pred_region
          %s1024 = ssub.s32 512, 512
          %1025 = vsyncadd %s1016, %s1024
          %s1026 = smul.addr %s25, 4
          %s1027 = sadd.s32 %s26, %s1026
          %s1028 = smul.addr %s1027, 128
          %s1029 = scalar_lea.hbm %s3, %s1028
          %s1030 = sshll.u32 %s1019, 4
          %s1031 = int_to_ptr.vmem [resolvable:$true] %s1030
          %1036 = dma.vmem_to_hbm [thread:$0]  %s1031, 512, %s1029, %s1016, 128, 128, 8
        $region44: #{tpu_custom_call.1} parent=31 // pred_fallthru
          _
      $region32: #{tpu_custom_call.1} parent=5 // pred_fallthru
        _
      %p1037 = scmp.le.s32.totalorder 2, %s16
      // Predicated region
      $region45: #{tpu_custom_call.1} parent=5 // pred_check
        %p1038 = pneg %p1037
      $region46: #{tpu_custom_call.1} parent=5 // pred_check_branch
        %1040 = sbr.rel (%p1038) target = $region48
      $region47: #{tpu_custom_call.1} parent=5 // pred_region
        %s1041 = ssub.s32 %s16, 2
        // Predicated region
        $region49: #{tpu_custom_call.1} parent=47 // pred_check
          %p1042 = pneg %p129
        $region50: #{tpu_custom_call.1} parent=47 // pred_check_branch
          %1044 = sbr.rel (%p1042) target = $region52
        $region51: #{tpu_custom_call.1} parent=47 // pred_region
          %s1045 = sand.u32 %s114, 1
          %s1046 = scalar_lea.sflag [#allocation4], %s1045
          %s1047 = sand.u32 %s114, 1
          %s1048 = smul.addr %s1047, 32
          %s1049 = scalar_lea.vmem [#allocation7], %s1048
          %1050 = dma.done %s1046, 512
        $region52: #{tpu_custom_call.1} parent=47 // pred_fallthru
          _
      $region48: #{tpu_custom_call.1} parent=5 // pred_fallthru
        _
    $region6: #{tpu_custom_call.1} parent=1 // loop_footer
      %s20 = sadd.s32 1, %s16
    $region7: #{tpu_custom_call.1} parent=1 // loop_footer_branch
      %15 = sbr.rel target = $region3
    $region8: #{tpu_custom_call.1} parent=1 // loop_exit
      _
    %1051 = vsyncpa [#allocation3], 1
    %s1052 = scalar_lea.sflag [#allocation3], 1
    %1053 = vsyncpa %s1052, 1
    %1054 = vsyncpa [#allocation6], 1
    %1055 = vsyncpa [#allocation4], 1
    %s1056 = scalar_lea.sflag [#allocation4], 1
    %1057 = vsyncpa %s1056, 1

// kernel: tpu_custom_call.1
$region0: #{tpu_custom_call.1}
  #allocation0 [shape = 'u32[]', space=smem, size = 0x4, offset = 0x4, fixed_abs, tag = 'smem constant byte address 0x4 - core index']
  #allocation1 [shape = 'u32[144,128]{1,0:T(1,128)}', space=vmem, size = 0x12000, scoped, tag = 'internal scratch']
  %s0 = inlined_call_operand.hbm [shape: f32[2,128,256], index: 0, kind: input, shape index: {}]
  %s1 = inlined_call_operand.hbm [shape: f32[256,512], index: 1, kind: input, shape index: {}]
  %s2 = inlined_call_operand.vmem [shape: f32[256,32], index: 2, kind: input, shape index: {}]
  %s3 = inlined_call_operand.hbm [shape: f32[2,32,128], index: 3, kind: output, shape index: {}]
  %s4 = sld [smem:[#allocation0]]
  $region53: #{tpu_custom_call.1} parent=0
    _
  %s6 = ssub.s32 1, %s4
  %s7 = scalar_select 0, %s6, %s4
  $region1: #{tpu_custom_call.1} parent=0
    #allocation2 [shape = 'u8[262144]{0}', space=vmem, size = 0x40000, scoped, tag = 'input window, operand 0']
    #allocation3 [shape = 's32[2]{0}', space=sflag, size = 0x8, scoped, tag = 'scoped memory for tpu_custom_call.1']
    #allocation4 [shape = 's32[2]{0}', space=sflag, size = 0x8, scoped, tag = 'scoped memory for tpu_custom_call.1']
    #allocation5 [shape = 'u8[524288]{0}', space=vmem, size = 0x80000, scoped, tag = 'input window, operand 1, single buffered']
    #allocation6 [shape = 's32[1]{0}', space=sflag, size = 0x4, scoped, tag = 'scoped memory for tpu_custom_call.1']
    #allocation7 [shape = 'u8[32768]{0}', space=vmem, size = 0x8000, scoped, tag = 'output window, operand 0']
    %8 = vsyncpa [#allocation3], 0
    %s9 = scalar_lea.sflag [#allocation3], 1
    %10 = vsyncpa %s9, 0
    %11 = vsyncpa [#allocation6], 0
    %12 = vsyncpa [#allocation4], 0
    %s13 = scalar_lea.sflag [#allocation4], 1
    %14 = vsyncpa %s13, 0
    loop: start=0, step=1, limit=4
    $region2: #{tpu_custom_call.1} parent=1 // loop_pre_header
      _
    $region3: #{tpu_custom_call.1} parent=1 // loop_header
      %s16 = sphi 0, %s20
      %p17 = scmp.ge.s32.totalorder %s16, 4
      %s23 = sphi 0, %s35
      %s24 = sphi 0, %s31
      %s25 = sphi 0, %s23
      %s26 = sphi 0, %s24
      %s27 = sphi 0, %s25
      %s28 = sphi 0, %s26
      %s40 = sphi 0, %s42
      %s43 = sphi 0, %s40
      %s44 = sphi 0, %s43
      %s60 = sphi 0, %s44
      %s64 = sphi 0, %s64
      %s66 = sphi 0, %s64
      %s67 = sphi 0, %s66
      %s81 = sphi 0, %s67
      %s85 = sphi 0, %s85
      %s87 = sphi 0, %s85
      %s88 = sphi 0, %s87
      %s102 = sphi 0, %s88
      %s110 = sphi 0, %s112
      %s113 = sphi 0, %s110
      %s114 = sphi 0, %s113
      %s130 = sphi 0, %s114
    $region4: #{tpu_custom_call.1} parent=1 // loop_header_branch
      %19 = sbr.rel (%p17) target = $region8
    $region5: #{tpu_custom_call.1} parent=1 // loop_body
      %s21 = ssub.s32 %s16, 1
      %s22 = ssub.s32 %s16, 2
      %s29 = sadd.s32 1, %s24
      %p30 = scmp.ge.s32.totalorder %s29, 1
      %s31 = scalar_select %p30, 0, %s29
      %s32 = sadd.s32 1, %s23
      %s33 = scalar_select %p30, %s32, %s23
      %p34 = scmp.ge.s32.totalorder %s33, 2
      %s35 = scalar_select %p34, 0, %s33
      %s36 = ssub.s32 %s23, %s35
      %s37 = ssub.s32 %s24, %s31
      %s38 = sor.u32 %s36, %s37
      %p39 = scmp.eq.s32.totalorder %s38, 0
      %s41 = sadd.s32 %s40, 1
      %s42 = scalar_select %p39, %s40, %s41
      %p45 = pneg %p39
      %p46 = scmp.eq.s32.totalorder %s16, 1
      %p47 = por %p45, %p46
      %p48 = scmp.ne.s32.totalorder %s40, %s43
      %p49 = scmp.eq.s32.totalorder %s16, 0
      %p50 = por %p48, %p49
      %p51 = scmp.ne.s32.totalorder %s40, %s43
      %p52 = scmp.eq.s32.totalorder %s21, 1
      %p53 = por %p51, %p52
      %p54 = scmp.ne.s32.totalorder %s43, %s44
      %p55 = scmp.eq.s32.totalorder %s21, 0
      %p56 = por %p54, %p55
      %p57 = scmp.ne.s32.totalorder %s43, %s44
      %p58 = scmp.eq.s32.totalorder %s22, 1
      %p59 = por %p57, %p58
      %p61 = scmp.ne.s32.totalorder %s44, %s60
      %p62 = scmp.eq.s32.totalorder %s22, 0
      %p63 = por %p61, %p62
      %s65 = sadd.s32 %s64, 1
      %p68 = scmp.eq.s32.totalorder %s16, 1
      %p69 = scmp.ne.s32.totalorder %s64, %s66
      %p70 = scmp.eq.s32.totalorder %s16, 0
      %p71 = por %p69, %p70
      %p72 = scmp.ne.s32.totalorder %s64, %s66
      %p73 = scmp.eq.s32.totalorder %s21, 1
      %p74 = por %p72, %p73
      %p75 = scmp.ne.s32.totalorder %s66, %s67
      %p76 = scmp.eq.s32.totalorder %s21, 0
      %p77 = por %p75, %p76
      %p78 = scmp.ne.s32.totalorder %s66, %s67
      %p79 = scmp.eq.s32.totalorder %s22, 1
      %p80 = por %p78, %p79
      %p82 = scmp.ne.s32.totalorder %s67, %s81
      %p83 = scmp.eq.s32.totalorder %s22, 0
      %p84 = por %p82, %p83
      %s86 = sadd.s32 %s85, 1
      %p89 = scmp.eq.s32.totalorder %s16, 1
      %p90 = scmp.ne.s32.totalorder %s85, %s87
      %p91 = scmp.eq.s32.totalorder %s16, 0
      %p92 = por %p90, %p91
      %p93 = scmp.ne.s32.totalorder %s85, %s87
      %p94 = scmp.eq.s32.totalorder %s21, 1
      %p95 = por %p93, %p94
      %p96 = scmp.ne.s32.totalorder %s87, %s88
      %p97 = scmp.eq.s32.totalorder %s21, 0
      %p98 = por %p96, %p97
      %p99 = scmp.ne.s32.totalorder %s87, %s88
      %p100 = scmp.eq.s32.totalorder %s22, 1
      %p101 = por %p99, %p100
      %p103 = scmp.ne.s32.totalorder %s88, %s102
      %p104 = scmp.eq.s32.totalorder %s22, 0
      %p105 = por %p103, %p104
      %s106 = ssub.s32 %s23, %s35
      %s107 = ssub.s32 %s24, %s31
      %s108 = sor.u32 %s106, %s107
      %p109 = scmp.eq.s32.totalorder %s108, 0
      %s111 = sadd.s32 %s110, 1
      %s112 = scalar_select %p109, %s110, %s111
      %p115 = pneg %p109
      %p116 = scmp.eq.s32.totalorder %s16, 1
      %p117 = por %p115, %p116
      %p118 = scmp.ne.s32.totalorder %s110, %s113
      %p119 = scmp.eq.s32.totalorder %s16, 0
      %p120 = por %p118, %p119
      %p121 = scmp.ne.s32.totalorder %s110, %s113
      %p122 = scmp.eq.s32.totalorder %s21, 1
      %p123 = por %p121, %p122
      %p124 = scmp.ne.s32.totalorder %s113, %s114
      %p125 = scmp.eq.s32.totalorder %s21, 0
      %p126 = por %p124, %p125
      %p127 = scmp.ne.s32.totalorder %s113, %s114
      %p128 = scmp.eq.s32.totalorder %s22, 1
      %p129 = por %p127, %p128
      %p131 = scmp.ne.s32.totalorder %s114, %s130
      %p132 = scmp.eq.s32.totalorder %s22, 0
      %p133 = por %p131, %p132
      %p134 = scmp.le.s32.totalorder 1, %s16
      %p135 = scmp.lt.s32.totalorder %s16, 3
      %p136 = pnand %p134, %p135
      %p137 = pneg %p136
      // Predicated region
      $region9: #{tpu_custom_call.1} parent=5 // pred_check
        _
      $region10: #{tpu_custom_call.1} parent=5 // pred_check_branch
        %139 = sbr.rel (%p136) target = $region12
      $region11: #{tpu_custom_call.1} parent=5 // pred_region
        %s140 = ssub.s32 %s16, 1
        // Predicated region
        $region13: #{tpu_custom_call.1} parent=11 // pred_check
          %p141 = pneg %p77
        $region14: #{tpu_custom_call.1} parent=11 // pred_check_branch
          %143 = sbr.rel (%p141) target = $region16
        $region15: #{tpu_custom_call.1} parent=11 // pred_region
          %s145 = ssub.s32 16384, 16384
          %146 = vsyncadd [#allocation6], %s145
          %s147 = sshll.u32 [#allocation5], 4
          %s148 = int_to_ptr.vmem [resolvable:$true] %s147
          %153 = dma.hbm_to_vmem [thread:$0]  %s1, 16384, %s148, [#allocation6], 512, 512, 32
        $region16: #{tpu_custom_call.1} parent=11 // pred_fallthru
          _
        // Predicated region
        $region17: #{tpu_custom_call.1} parent=11 // pred_check
          %p154 = pneg %p98
        $region18: #{tpu_custom_call.1} parent=11 // pred_check_branch
          %156 = sbr.rel (%p154) target = $region20
        $region19: #{tpu_custom_call.1} parent=11 // pred_region
          _
        $region20: #{tpu_custom_call.1} parent=11 // pred_fallthru
          _
      $region12: #{tpu_custom_call.1} parent=5 // pred_fallthru
        _
      %p157 = scmp.lt.s32.totalorder %s16, 2
      // Predicated region
      $region21: #{tpu_custom_call.1} parent=5 // pred_check
        %p158 = pneg %p157
      $region22: #{tpu_custom_call.1} parent=5 // pred_check_branch
        %160 = sbr.rel (%p158) target = $region24
      $region23: #{tpu_custom_call.1} parent=5 // pred_region
        // Predicated region
        $region25: #{tpu_custom_call.1} parent=23 // pred_check
          %p161 = pneg %p50
        $region26: #{tpu_custom_call.1} parent=23 // pred_check_branch
          %163 = sbr.rel (%p161) target = $region28
        $region27: #{tpu_custom_call.1} parent=23 // pred_region
          %s164 = sand.u32 %s40, 1
          %s165 = scalar_lea.sflag [#allocation3], %s164
          %s166 = sand.u32 %s40, 1
          %s167 = smul.addr %s166, 256
          %s168 = scalar_lea.vmem [#allocation2], %s167
          %s169 = smul.u32 16, %s24
          %s171 = ssub.s32 4096, 4096
          %172 = vsyncadd %s165, %s171
          %s173 = smul.addr %s169, 2
          %s174 = smul.addr %s23, 32
          %s175 = sadd.s32 %s173, %s174
          %s176 = smul.addr %s175, 128
          %s177 = scalar_lea.hbm %s0, %s176
          %s178 = sshll.u32 %s168, 4
          %s179 = int_to_ptr.vmem [resolvable:$true] %s178
          %184 = dma.hbm_to_vmem [thread:$0]  %s177, 4096, %s179, %s165, 256, 256, 16
        $region28: #{tpu_custom_call.1} parent=23 // pred_fallthru
          _
      $region24: #{tpu_custom_call.1} parent=5 // pred_fallthru
        _
      %p185 = scmp.le.s32.totalorder 1, %s16
      %p186 = scmp.lt.s32.totalorder %s16, 3
      %p187 = pnand %p185, %p186
      %p188 = pneg %p187
      // Predicated region
      $region29: #{tpu_custom_call.1} parent=5 // pred_check
        _
      $region30: #{tpu_custom_call.1} parent=5 // pred_check_branch
        %190 = sbr.rel (%p187) target = $region32
      $region31: #{tpu_custom_call.1} parent=5 // pred_region
        %s191 = ssub.s32 %s16, 1
        %s192 = sand.u32 %s43, 1
        %s193 = scalar_lea.sflag [#allocation3], %s192
        %s194 = sand.u32 %s43, 1
        %s195 = smul.addr %s194, 256
        %s196 = scalar_lea.vmem [#allocation2], %s195
        // Predicated region
        $region33: #{tpu_custom_call.1} parent=31 // pred_check
          %p197 = pneg %p56
        $region34: #{tpu_custom_call.1} parent=31 // pred_check_branch
          %199 = sbr.rel (%p197) target = $region36
        $region35: #{tpu_custom_call.1} parent=31 // pred_region
          %200 = dma.done %s193, 4096
        $region36: #{tpu_custom_call.1} parent=31 // pred_fallthru
          _
        // Predicated region
        $region37: #{tpu_custom_call.1} parent=31 // pred_check
          %p201 = pneg %p77
        $region38: #{tpu_custom_call.1} parent=31 // pred_check_branch
          %203 = sbr.rel (%p201) target = $region40
        $region39: #{tpu_custom_call.1} parent=31 // pred_region
          %204 = dma.done [#allocation6], 16384
        $region40: #{tpu_custom_call.1} parent=31 // pred_fallthru
          _
        %s205 = sand.u32 %s43, 1
        %s206 = scalar_lea.sflag [#allocation3], %s205
        %s207 = sand.u32 %s43, 1
        %s208 = smul.addr %s207, 256
        %s209 = scalar_lea.vmem [#allocation2], %s208
        %p210 = pneg %p56
        %p211 = pneg %p53
        %p212 = pneg %p77
        %p213 = pneg %p74
        %p214 = pneg %p98
        %p215 = pneg %p95
        %p216 = pneg %p126
        %p217 = pneg %p123
        %s218 = sand.u32 %s113, 1
        %s219 = scalar_lea.sflag [#allocation4], %s218
        %s220 = sand.u32 %s113, 1
        %s221 = smul.addr %s220, 32
        %s222 = scalar_lea.vmem [#allocation7], %s221
        %s223 = smul.u32 16, %s26
        %v224 = vld [vmem:[%s196] sm:$0xff]
        %v225 = vld [vmem:[%s196 + $0x8] sm:$0xff]
        %v226 = vld [vmem:[%s196 + $0x10] sm:$0xff]
        %v227 = vld [vmem:[%s196 + $0x18] sm:$0xff]
        %v228 = vld [vmem:[%s196 + $0x20] sm:$0xff]
        %v229 = vld [vmem:[%s196 + $0x28] sm:$0xff]
        %v230 = vld [vmem:[%s196 + $0x30] sm:$0xff]
        %v231 = vld [vmem:[%s196 + $0x38] sm:$0xff]
        %v232 = vld [vmem:[%s196 + $0x40] sm:$0xff]
        %v233 = vld [vmem:[%s196 + $0x48] sm:$0xff]
        %v234 = vld [vmem:[%s196 + $0x50] sm:$0xff]
        %v235 = vld [vmem:[%s196 + $0x58] sm:$0xff]
        %v236 = vld [vmem:[%s196 + $0x60] sm:$0xff]
        %v237 = vld [vmem:[%s196 + $0x68] sm:$0xff]
        %v238 = vld [vmem:[%s196 + $0x70] sm:$0xff]
        %v239 = vld [vmem:[%s196 + $0x78] sm:$0xff]
        %v240 = vld [vmem:[%s196 + $0x80] sm:$0xff]
        %v241 = vld [vmem:[%s196 + $0x88] sm:$0xff]
        %v242 = vld [vmem:[%s196 + $0x90] sm:$0xff]
        %v243 = vld [vmem:[%s196 + $0x98] sm:$0xff]
        %v244 = vld [vmem:[%s196 + $0xa0] sm:$0xff]
        %v245 = vld [vmem:[%s196 + $0xa8] sm:$0xff]
        %v246 = vld [vmem:[%s196 + $0xb0] sm:$0xff]
        %v247 = vld [vmem:[%s196 + $0xb8] sm:$0xff]
        %v248 = vld [vmem:[%s196 + $0xc0] sm:$0xff]
        %v249 = vld [vmem:[%s196 + $0xc8] sm:$0xff]
        %v250 = vld [vmem:[%s196 + $0xd0] sm:$0xff]
        %v251 = vld [vmem:[%s196 + $0xd8] sm:$0xff]
        %v252 = vld [vmem:[%s196 + $0xe0] sm:$0xff]
        %v253 = vld [vmem:[%s196 + $0xe8] sm:$0xff]
        %v254 = vld [vmem:[%s196 + $0xf0] sm:$0xff]
        %v255 = vld [vmem:[%s196 + $0xf8] sm:$0xff]
        %v256 = vld [vmem:[#allocation5] sm:$0xff]
        %v257 = vld [vmem:[#allocation5 + $0x8] sm:$0xff]
        %v258 = vld [vmem:[#allocation5 + $0x10] sm:$0xff]
        %v259 = vld [vmem:[#allocation5 + $0x18] sm:$0xff]
        %v260 = vld [vmem:[#allocation5 + $0x20] sm:$0xff]
        %v261 = vld [vmem:[#allocation5 + $0x28] sm:$0xff]
        %v262 = vld [vmem:[#allocation5 + $0x30] sm:$0xff]
        %v263 = vld [vmem:[#allocation5 + $0x38] sm:$0xff]
        %v264 = vld [vmem:[#allocation5 + $0x40] sm:$0xff]
        %v265 = vld [vmem:[#allocation5 + $0x48] sm:$0xff]
        %v266 = vld [vmem:[#allocation5 + $0x50] sm:$0xff]
        %v267 = vld [vmem:[#allocation5 + $0x58] sm:$0xff]
        %v268 = vld [vmem:[#allocation5 + $0x60] sm:$0xff]
        %v269 = vld [vmem:[#allocation5 + $0x68] sm:$0xff]
        %v270 = vld [vmem:[#allocation5 + $0x70] sm:$0xff]
        %v271 = vld [vmem:[#allocation5 + $0x78] sm:$0xff]
        %v272 = vld [vmem:[#allocation5 + $0x80] sm:$0xff]
        %v273 = vld [vmem:[#allocation5 + $0x88] sm:$0xff]
        %v274 = vld [vmem:[#allocation5 + $0x90] sm:$0xff]
        %v275 = vld [vmem:[#allocation5 + $0x98] sm:$0xff]
        %v276 = vld [vmem:[#allocation5 + $0xa0] sm:$0xff]
        %v277 = vld [vmem:[#allocation5 + $0xa8] sm:$0xff]
        %v278 = vld [vmem:[#allocation5 + $0xb0] sm:$0xff]
        %v279 = vld [vmem:[#allocation5 + $0xb8] sm:$0xff]
        %v280 = vld [vmem:[#allocation5 + $0xc0] sm:$0xff]
        %v281 = vld [vmem:[#allocation5 + $0xc8] sm:$0xff]
        %v282 = vld [vmem:[#allocation5 + $0xd0] sm:$0xff]
        %v283 = vld [vmem:[#allocation5 + $0xd8] sm:$0xff]
        %v284 = vld [vmem:[#allocation5 + $0xe0] sm:$0xff]
        %v285 = vld [vmem:[#allocation5 + $0xe8] sm:$0xff]
        %v286 = vld [vmem:[#allocation5 + $0xf0] sm:$0xff]
        %v287 = vld [vmem:[#allocation5 + $0xf8] sm:$0xff]
        %v288 = vld [vmem:[#allocation5 + $0x100] sm:$0xff]
        %v289 = vld [vmem:[#allocation5 + $0x108] sm:$0xff]
        %v290 = vld [vmem:[#allocation5 + $0x110] sm:$0xff]
        %v291 = vld [vmem:[#allocation5 + $0x118] sm:$0xff]
        %v292 = vld [vmem:[#allocation5 + $0x120] sm:$0xff]
        %v293 = vld [vmem:[#allocation5 + $0x128] sm:$0xff]
        %v294 = vld [vmem:[#allocation5 + $0x130] sm:$0xff]
        %v295 = vld [vmem:[#allocation5 + $0x138] sm:$0xff]
        %v296 = vld [vmem:[#allocation5 + $0x140] sm:$0xff]
        %v297 = vld [vmem:[#allocation5 + $0x148] sm:$0xff]
        %v298 = vld [vmem:[#allocation5 + $0x150] sm:$0xff]
        %v299 = vld [vmem:[#allocation5 + $0x158] sm:$0xff]
        %v300 = vld [vmem:[#allocation5 + $0x160] sm:$0xff]
        %v301 = vld [vmem:[#allocation5 + $0x168] sm:$0xff]
        %v302 = vld [vmem:[#allocation5 + $0x170] sm:$0xff]
        %v303 = vld [vmem:[#allocation5 + $0x178] sm:$0xff]
        %v304 = vld [vmem:[#allocation5 + $0x180] sm:$0xff]
        %v305 = vld [vmem:[#allocation5 + $0x188] sm:$0xff]
        %v306 = vld [vmem:[#allocation5 + $0x190] sm:$0xff]
        %v307 = vld [vmem:[#allocation5 + $0x198] sm:$0xff]
        %v308 = vld [vmem:[#allocation5 + $0x1a0] sm:$0xff]
        %v309 = vld [vmem:[#allocation5 + $0x1a8] sm:$0xff]
        %v310 = vld [vmem:[#allocation5 + $0x1b0] sm:$0xff]
        %v311 = vld [vmem:[#allocation5 + $0x1b8] sm:$0xff]
        %v312 = vld [vmem:[#allocation5 + $0x1c0] sm:$0xff]
        %v313 = vld [vmem:[#allocation5 + $0x1c8] sm:$0xff]
        %v314 = vld [vmem:[#allocation5 + $0x1d0] sm:$0xff]
        %v315 = vld [vmem:[#allocation5 + $0x1d8] sm:$0xff]
        %v316 = vld [vmem:[#allocation5 + $0x1e0] sm:$0xff]
        %v317 = vld [vmem:[#allocation5 + $0x1e8] sm:$0xff]
        %v318 = vld [vmem:[#allocation5 + $0x1f0] sm:$0xff]
        %v319 = vld [vmem:[#allocation5 + $0x1f8] sm:$0xff]
        %v320 = vld [vmem:[#allocation5 + $0x200] sm:$0xff]
        %v321 = vld [vmem:[#allocation5 + $0x208] sm:$0xff]
        %v322 = vld [vmem:[#allocation5 + $0x210] sm:$0xff]
        %v323 = vld [vmem:[#allocation5 + $0x218] sm:$0xff]
        %v324 = vld [vmem:[#allocation5 + $0x220] sm:$0xff]
        %v325 = vld [vmem:[#allocation5 + $0x228] sm:$0xff]
        %v326 = vld [vmem:[#allocation5 + $0x230] sm:$0xff]
        %v327 = vld [vmem:[#allocation5 + $0x238] sm:$0xff]
        %v328 = vld [vmem:[#allocation5 + $0x240] sm:$0xff]
        %v329 = vld [vmem:[#allocation5 + $0x248] sm:$0xff]
        %v330 = vld [vmem:[#allocation5 + $0x250] sm:$0xff]
        %v331 = vld [vmem:[#allocation5 + $0x258] sm:$0xff]
        %v332 = vld [vmem:[#allocation5 + $0x260] sm:$0xff]
        %v333 = vld [vmem:[#allocation5 + $0x268] sm:$0xff]
        %v334 = vld [vmem:[#allocation5 + $0x270] sm:$0xff]
        %v335 = vld [vmem:[#allocation5 + $0x278] sm:$0xff]
        %v336 = vld [vmem:[#allocation5 + $0x280] sm:$0xff]
        %v337 = vld [vmem:[#allocation5 + $0x288] sm:$0xff]
        %v338 = vld [vmem:[#allocation5 + $0x290] sm:$0xff]
        %v339 = vld [vmem:[#allocation5 + $0x298] sm:$0xff]
        %v340 = vld [vmem:[#allocation5 + $0x2a0] sm:$0xff]
        %v341 = vld [vmem:[#allocation5 + $0x2a8] sm:$0xff]
        %v342 = vld [vmem:[#allocation5 + $0x2b0] sm:$0xff]
        %v343 = vld [vmem:[#allocation5 + $0x2b8] sm:$0xff]
        %v344 = vld [vmem:[#allocation5 + $0x2c0] sm:$0xff]
        %v345 = vld [vmem:[#allocation5 + $0x2c8] sm:$0xff]
        %v346 = vld [vmem:[#allocation5 + $0x2d0] sm:$0xff]
        %v347 = vld [vmem:[#allocation5 + $0x2d8] sm:$0xff]
        %v348 = vld [vmem:[#allocation5 + $0x2e0] sm:$0xff]
        %v349 = vld [vmem:[#allocation5 + $0x2e8] sm:$0xff]
        %v350 = vld [vmem:[#allocation5 + $0x2f0] sm:$0xff]
        %v351 = vld [vmem:[#allocation5 + $0x2f8] sm:$0xff]
        %v352 = vld [vmem:[#allocation5 + $0x300] sm:$0xff]
        %v353 = vld [vmem:[#allocation5 + $0x308] sm:$0xff]
        %v354 = vld [vmem:[#allocation5 + $0x310] sm:$0xff]
        %v355 = vld [vmem:[#allocation5 + $0x318] sm:$0xff]
        %v356 = vld [vmem:[#allocation5 + $0x320] sm:$0xff]
        %v357 = vld [vmem:[#allocation5 + $0x328] sm:$0xff]
        %v358 = vld [vmem:[#allocation5 + $0x330] sm:$0xff]
        %v359 = vld [vmem:[#allocation5 + $0x338] sm:$0xff]
        %v360 = vld [vmem:[#allocation5 + $0x340] sm:$0xff]
        %v361 = vld [vmem:[#allocation5 + $0x348] sm:$0xff]
        %v362 = vld [vmem:[#allocation5 + $0x350] sm:$0xff]
        %v363 = vld [vmem:[#allocation5 + $0x358] sm:$0xff]
        %v364 = vld [vmem:[#allocation5 + $0x360] sm:$0xff]
        %v365 = vld [vmem:[#allocation5 + $0x368] sm:$0xff]
        %v366 = vld [vmem:[#allocation5 + $0x370] sm:$0xff]
        %v367 = vld [vmem:[#allocation5 + $0x378] sm:$0xff]
        %v368 = vld [vmem:[#allocation5 + $0x380] sm:$0xff]
        %v369 = vld [vmem:[#allocation5 + $0x388] sm:$0xff]
        %v370 = vld [vmem:[#allocation5 + $0x390] sm:$0xff]
        %v371 = vld [vmem:[#allocation5 + $0x398] sm:$0xff]
        %v372 = vld [vmem:[#allocation5 + $0x3a0] sm:$0xff]
        %v373 = vld [vmem:[#allocation5 + $0x3a8] sm:$0xff]
        %v374 = vld [vmem:[#allocation5 + $0x3b0] sm:$0xff]
        %v375 = vld [vmem:[#allocation5 + $0x3b8] sm:$0xff]
        %v376 = vld [vmem:[#allocation5 + $0x3c0] sm:$0xff]
        %v377 = vld [vmem:[#allocation5 + $0x3c8] sm:$0xff]
        %v378 = vld [vmem:[#allocation5 + $0x3d0] sm:$0xff]
        %v379 = vld [vmem:[#allocation5 + $0x3d8] sm:$0xff]
        %v380 = vld [vmem:[#allocation5 + $0x3e0] sm:$0xff]
        %v381 = vld [vmem:[#allocation5 + $0x3e8] sm:$0xff]
        %v382 = vld [vmem:[#allocation5 + $0x3f0] sm:$0xff]
        %v383 = vld [vmem:[#allocation5 + $0x3f8] sm:$0xff]
        %384 = vmatprep.subr.mxu0 %v317
        %385 = vmatpush1.msra.mxu0 %v316
        %386 = vmatprep.subr.mxu0 %v313
        %387 = vmatpush1.msra.mxu0 %v312
        %388 = vmatprep.subr.mxu0 %v309
        %389 = vmatpush1.msra.mxu0 %v308
        %390 = vmatprep.subr.mxu0 %v305
        %391 = vmatpush1.msra.mxu0 %v304
        %392 = vmatprep.subr.mxu0 %v301
        %393 = vmatpush1.msra.mxu0 %v300
        %394 = vmatprep.subr.mxu0 %v297
        %395 = vmatpush1.msra.mxu0 %v296
        %396 = vmatprep.subr.mxu0 %v293
        %397 = vmatpush1.msra.mxu0 %v292
        %398 = vmatprep.subr.mxu0 %v289
        %399 = vmatpush1.msra.mxu0 %v288
        %400 = vmatprep.subr.mxu0 %v285
        %401 = vmatpush1.msra.mxu0 %v284
        %402 = vmatprep.subr.mxu0 %v281
        %403 = vmatpush1.msra.mxu0 %v280
        %404 = vmatprep.subr.mxu0 %v277
        %405 = vmatpush1.msra.mxu0 %v276
        %406 = vmatprep.subr.mxu0 %v273
        %407 = vmatpush1.msra.mxu0 %v272
        %408 = vmatprep.subr.mxu0 %v269
        %409 = vmatpush1.msra.mxu0 %v268
        %410 = vmatprep.subr.mxu0 %v265
        %411 = vmatpush1.msra.mxu0 %v264
        %412 = vmatprep.subr.mxu0 %v261
        %413 = vmatpush1.msra.mxu0 %v260
        %414 = vmatprep.subr.mxu0 %v257
        %415 = vmatpush1.msra.mxu0 %v256
        %416 = vmatprep.subr.mxu0 %v381
        %417 = vmatpush2.msra.mxu0 %v380
        %418 = vmatprep.subr.mxu0 %v377
        %419 = vmatpush2.msra.mxu0 %v376
        %420 = vmatprep.subr.mxu0 %v373
        %421 = vmatpush2.msra.mxu0 %v372
        %422 = vmatprep.subr.mxu0 %v369
        %423 = vmatpush2.msra.mxu0 %v368
        %424 = vmatprep.subr.mxu0 %v365
        %425 = vmatpush2.msra.mxu0 %v364
        %426 = vmatprep.subr.mxu0 %v361
        %427 = vmatpush2.msra.mxu0 %v360
        %428 = vmatprep.subr.mxu0 %v357
        %429 = vmatpush2.msra.mxu0 %v356
        %430 = vmatprep.subr.mxu0 %v353
        %431 = vmatpush2.msra.mxu0 %v352
        %432 = vmatprep.subr.mxu0 %v349
        %433 = vmatpush2.msra.mxu0 %v348
        %434 = vmatprep.subr.mxu0 %v345
        %435 = vmatpush2.msra.mxu0 %v344
        %436 = vmatprep.subr.mxu0 %v341
        %437 = vmatpush2.msra.mxu0 %v340
        %438 = vmatprep.subr.mxu0 %v337
        %439 = vmatpush2.msra.mxu0 %v336
        %440 = vmatprep.subr.mxu0 %v333
        %441 = vmatpush2.msra.mxu0 %v332
        %442 = vmatprep.subr.mxu0 %v329
        %443 = vmatpush2.msra.mxu0 %v328
        %444 = vmatprep.subr.mxu0 %v325
        %445 = vmatpush2.msra.mxu0 %v324
        %446 = vmatprep.subr.mxu0 %v321
        %447 = vmatpush2.msra.mxu0 %v320
        %448 = vmatprep.mubr.f32.mxu0 %v225
        %449 = vmatmul.mubr.f32.gmra.mxu0 %v224
        %v450 = vpop.f32.mrf.mxu0
        %v451 = vadd.f32 0.0, %v450
        %v452 = vpop.f32.mrf.mxu0
        %v453 = vadd.f32 0.0, %v452
        %454 = vmatprep.mubr.f32.mxu0 %v227
        %455 = vmatmul.mubr.f32.gmra.mxu0 %v226
        %v456 = vpop.f32.mrf.mxu0
        %v457 = vadd.f32 0.0, %v456
        %v458 = vpop.f32.mrf.mxu0
        %v459 = vadd.f32 0.0, %v458
        %460 = vmatprep.mubr.f32.mxu0 %v229
        %461 = vmatmul.mubr.f32.gmra.mxu0 %v228
        %v462 = vpop.f32.mrf.mxu0
        %v463 = vadd.f32 0.0, %v462
        %v464 = vpop.f32.mrf.mxu0
        %v465 = vadd.f32 0.0, %v464
        %466 = vmatprep.mubr.f32.mxu0 %v231
        %467 = vmatmul.mubr.f32.gmra.mxu0 %v230
        %v468 = vpop.f32.mrf.mxu0
        %v469 = vadd.f32 0.0, %v468
        %v470 = vpop.f32.mrf.mxu0
        %v471 = vadd.f32 0.0, %v470
        %472 = vmatprep.mubr.f32.mxu0 %v233
        %473 = vmatmul.mubr.f32.gmra.mxu0 %v232
        %v474 = vpop.f32.mrf.mxu0
        %v475 = vadd.f32 0.0, %v474
        %v476 = vpop.f32.mrf.mxu0
        %v477 = vadd.f32 0.0, %v476
        %478 = vmatprep.mubr.f32.mxu0 %v235
        %479 = vmatmul.mubr.f32.gmra.mxu0 %v234
        %v480 = vpop.f32.mrf.mxu0
        %v481 = vadd.f32 0.0, %v480
        %v482 = vpop.f32.mrf.mxu0
        %v483 = vadd.f32 0.0, %v482
        %484 = vmatprep.mubr.f32.mxu0 %v237
        %485 = vmatmul.mubr.f32.gmra.mxu0 %v236
        %v486 = vpop.f32.mrf.mxu0
        %v487 = vadd.f32 0.0, %v486
        %v488 = vpop.f32.mrf.mxu0
        %v489 = vadd.f32 0.0, %v488
        %490 = vmatprep.mubr.f32.mxu0 %v239
        %491 = vmatmul.mubr.f32.gmra.mxu0 %v238
        %v492 = vpop.f32.mrf.mxu0
        %v493 = vadd.f32 0.0, %v492
        %v494 = vpop.f32.mrf.mxu0
        %v495 = vadd.f32 0.0, %v494
        %496 = vmatprep.mubr.f32.mxu0 %v241
        %497 = vmatmul.mubr.f32.gmra.mxu0 %v240
        %v498 = vpop.f32.mrf.mxu0
        %v499 = vadd.f32 0.0, %v498
        %v500 = vpop.f32.mrf.mxu0
        %v501 = vadd.f32 0.0, %v500
        %502 = vmatprep.mubr.f32.mxu0 %v243
        %503 = vmatmul.mubr.f32.gmra.mxu0 %v242
        %v504 = vpop.f32.mrf.mxu0
        %v505 = vadd.f32 0.0, %v504
        %v506 = vpop.f32.mrf.mxu0
        %v507 = vadd.f32 0.0, %v506
        %508 = vmatprep.mubr.f32.mxu0 %v245
        %509 = vmatmul.mubr.f32.gmra.mxu0 %v244
        %v510 = vpop.f32.mrf.mxu0
        %v511 = vadd.f32 0.0, %v510
        %v512 = vpop.f32.mrf.mxu0
        %v513 = vadd.f32 0.0, %v512
        %514 = vmatprep.mubr.f32.mxu0 %v247
        %515 = vmatmul.mubr.f32.gmra.mxu0 %v246
        %v516 = vpop.f32.mrf.mxu0
        %v517 = vadd.f32 0.0, %v516
        %v518 = vpop.f32.mrf.mxu0
        %v519 = vadd.f32 0.0, %v518
        %520 = vmatprep.mubr.f32.mxu0 %v249
        %521 = vmatmul.mubr.f32.gmra.mxu0 %v248
        %v522 = vpop.f32.mrf.mxu0
        %v523 = vadd.f32 0.0, %v522
        %v524 = vpop.f32.mrf.mxu0
        %v525 = vadd.f32 0.0, %v524
        %526 = vmatprep.mubr.f32.mxu0 %v251
        %527 = vmatmul.mubr.f32.gmra.mxu0 %v250
        %v528 = vpop.f32.mrf.mxu0
        %v529 = vadd.f32 0.0, %v528
        %v530 = vpop.f32.mrf.mxu0
        %v531 = vadd.f32 0.0, %v530
        %532 = vmatprep.mubr.f32.mxu0 %v253
        %533 = vmatmul.mubr.f32.gmra.mxu0 %v252
        %v534 = vpop.f32.mrf.mxu0
        %v535 = vadd.f32 0.0, %v534
        %v536 = vpop.f32.mrf.mxu0
        %v537 = vadd.f32 0.0, %v536
        %538 = vmatprep.mubr.f32.mxu0 %v255
        %539 = vmatmul.mubr.f32.gmra.mxu0 %v254
        %v540 = vpop.f32.mrf.mxu0
        %v541 = vadd.f32 0.0, %v540
        %v542 = vpop.f32.mrf.mxu0
        %v543 = vadd.f32 0.0, %v542
        %544 = vdwg.mxu0
        %545 = vmatprep.subr.mxu0 %v319
        %546 = vmatpush1.msra.mxu0 %v318
        %547 = vmatprep.subr.mxu0 %v315
        %548 = vmatpush1.msra.mxu0 %v314
        %549 = vmatprep.subr.mxu0 %v311
        %550 = vmatpush1.msra.mxu0 %v310
        %551 = vmatprep.subr.mxu0 %v307
        %552 = vmatpush1.msra.mxu0 %v306
        %553 = vmatprep.subr.mxu0 %v303
        %554 = vmatpush1.msra.mxu0 %v302
        %555 = vmatprep.subr.mxu0 %v299
        %556 = vmatpush1.msra.mxu0 %v298
        %557 = vmatprep.subr.mxu0 %v295
        %558 = vmatpush1.msra.mxu0 %v294
        %559 = vmatprep.subr.mxu0 %v291
        %560 = vmatpush1.msra.mxu0 %v290
        %561 = vmatprep.subr.mxu0 %v287
        %562 = vmatpush1.msra.mxu0 %v286
        %563 = vmatprep.subr.mxu0 %v283
        %564 = vmatpush1.msra.mxu0 %v282
        %565 = vmatprep.subr.mxu0 %v279
        %566 = vmatpush1.msra.mxu0 %v278
        %567 = vmatprep.subr.mxu0 %v275
        %568 = vmatpush1.msra.mxu0 %v274
        %569 = vmatprep.subr.mxu0 %v271
        %570 = vmatpush1.msra.mxu0 %v270
        %571 = vmatprep.subr.mxu0 %v267
        %572 = vmatpush1.msra.mxu0 %v266
        %573 = vmatprep.subr.mxu0 %v263
        %574 = vmatpush1.msra.mxu0 %v262
        %575 = vmatprep.subr.mxu0 %v259
        %576 = vmatpush1.msra.mxu0 %v258
        %577 = vmatprep.subr.mxu0 %v383
        %578 = vmatpush2.msra.mxu0 %v382
        %579 = vmatprep.subr.mxu0 %v379
        %580 = vmatpush2.msra.mxu0 %v378
        %581 = vmatprep.subr.mxu0 %v375
        %582 = vmatpush2.msra.mxu0 %v374
        %583 = vmatprep.subr.mxu0 %v371
        %584 = vmatpush2.msra.mxu0 %v370
        %585 = vmatprep.subr.mxu0 %v367
        %586 = vmatpush2.msra.mxu0 %v366
        %587 = vmatprep.subr.mxu0 %v363
        %588 = vmatpush2.msra.mxu0 %v362
        %589 = vmatprep.subr.mxu0 %v359
        %590 = vmatpush2.msra.mxu0 %v358
        %591 = vmatprep.subr.mxu0 %v355
        %592 = vmatpush2.msra.mxu0 %v354
        %593 = vmatprep.subr.mxu0 %v351
        %594 = vmatpush2.msra.mxu0 %v350
        %595 = vmatprep.subr.mxu0 %v347
        %596 = vmatpush2.msra.mxu0 %v346
        %597 = vmatprep.subr.mxu0 %v343
        %598 = vmatpush2.msra.mxu0 %v342
        %599 = vmatprep.subr.mxu0 %v339
        %600 = vmatpush2.msra.mxu0 %v338
        %601 = vmatprep.subr.mxu0 %v335
        %602 = vmatpush2.msra.mxu0 %v334
        %603 = vmatprep.subr.mxu0 %v331
        %604 = vmatpush2.msra.mxu0 %v330
        %605 = vmatprep.subr.mxu0 %v327
        %606 = vmatpush2.msra.mxu0 %v326
        %607 = vmatprep.subr.mxu0 %v323
        %608 = vmatpush2.msra.mxu0 %v322
        %609 = vmatprep.mubr.f32.mxu0 %v225
        %610 = vmatmul.mubr.f32.gmra.mxu0 %v224
        %v611 = vpop.f32.mrf.mxu0
        %v612 = vadd.f32 0.0, %v611
        %v613 = vpop.f32.mrf.mxu0
        %v614 = vadd.f32 0.0, %v613
        %615 = vmatprep.mubr.f32.mxu0 %v227
        %616 = vmatmul.mubr.f32.gmra.mxu0 %v226
        %v617 = vpop.f32.mrf.mxu0
        %v618 = vadd.f32 0.0, %v617
        %v619 = vpop.f32.mrf.mxu0
        %v620 = vadd.f32 0.0, %v619
        %621 = vmatprep.mubr.f32.mxu0 %v229
        %622 = vmatmul.mubr.f32.gmra.mxu0 %v228
        %v623 = vpop.f32.mrf.mxu0
        %v624 = vadd.f32 0.0, %v623
        %v625 = vpop.f32.mrf.mxu0
        %v626 = vadd.f32 0.0, %v625
        %627 = vmatprep.mubr.f32.mxu0 %v231
        %628 = vmatmul.mubr.f32.gmra.mxu0 %v230
        %v629 = vpop.f32.mrf.mxu0
        %v630 = vadd.f32 0.0, %v629
        %v631 = vpop.f32.mrf.mxu0
        %v632 = vadd.f32 0.0, %v631
        %633 = vmatprep.mubr.f32.mxu0 %v233
        %634 = vmatmul.mubr.f32.gmra.mxu0 %v232
        %v635 = vpop.f32.mrf.mxu0
        %v636 = vadd.f32 0.0, %v635
        %v637 = vpop.f32.mrf.mxu0
        %v638 = vadd.f32 0.0, %v637
        %639 = vmatprep.mubr.f32.mxu0 %v235
        %640 = vmatmul.mubr.f32.gmra.mxu0 %v234
        %v641 = vpop.f32.mrf.mxu0
        %v642 = vadd.f32 0.0, %v641
        %v643 = vpop.f32.mrf.mxu0
        %v644 = vadd.f32 0.0, %v643
        %645 = vmatprep.mubr.f32.mxu0 %v237
        %646 = vmatmul.mubr.f32.gmra.mxu0 %v236
        %v647 = vpop.f32.mrf.mxu0
        %v648 = vadd.f32 0.0, %v647
        %v649 = vpop.f32.mrf.mxu0
        %v650 = vadd.f32 0.0, %v649
        %651 = vmatprep.mubr.f32.mxu0 %v239
        %652 = vmatmul.mubr.f32.gmra.mxu0 %v238
        %v653 = vpop.f32.mrf.mxu0
        %v654 = vadd.f32 0.0, %v653
        %v655 = vpop.f32.mrf.mxu0
        %v656 = vadd.f32 0.0, %v655
        %657 = vmatprep.mubr.f32.mxu0 %v241
        %658 = vmatmul.mubr.f32.gmra.mxu0 %v240
        %v659 = vpop.f32.mrf.mxu0
        %v660 = vadd.f32 0.0, %v659
        %v661 = vpop.f32.mrf.mxu0
        %v662 = vadd.f32 0.0, %v661
        %663 = vmatprep.mubr.f32.mxu0 %v243
        %664 = vmatmul.mubr.f32.gmra.mxu0 %v242
        %v665 = vpop.f32.mrf.mxu0
        %v666 = vadd.f32 0.0, %v665
        %v667 = vpop.f32.mrf.mxu0
        %v668 = vadd.f32 0.0, %v667
        %669 = vmatprep.mubr.f32.mxu0 %v245
        %670 = vmatmul.mubr.f32.gmra.mxu0 %v244
        %v671 = vpop.f32.mrf.mxu0
        %v672 = vadd.f32 0.0, %v671
        %v673 = vpop.f32.mrf.mxu0
        %v674 = vadd.f32 0.0, %v673
        %675 = vmatprep.mubr.f32.mxu0 %v247
        %676 = vmatmul.mubr.f32.gmra.mxu0 %v246
        %v677 = vpop.f32.mrf.mxu0
        %v678 = vadd.f32 0.0, %v677
        %v679 = vpop.f32.mrf.mxu0
        %v680 = vadd.f32 0.0, %v679
        %681 = vmatprep.mubr.f32.mxu0 %v249
        %682 = vmatmul.mubr.f32.gmra.mxu0 %v248
        %v683 = vpop.f32.mrf.mxu0
        %v684 = vadd.f32 0.0, %v683
        %v685 = vpop.f32.mrf.mxu0
        %v686 = vadd.f32 0.0, %v685
        %687 = vmatprep.mubr.f32.mxu0 %v251
        %688 = vmatmul.mubr.f32.gmra.mxu0 %v250
        %v689 = vpop.f32.mrf.mxu0
        %v690 = vadd.f32 0.0, %v689
        %v691 = vpop.f32.mrf.mxu0
        %v692 = vadd.f32 0.0, %v691
        %693 = vmatprep.mubr.f32.mxu0 %v253
        %694 = vmatmul.mubr.f32.gmra.mxu0 %v252
        %v695 = vpop.f32.mrf.mxu0
        %v696 = vadd.f32 0.0, %v695
        %v697 = vpop.f32.mrf.mxu0
        %v698 = vadd.f32 0.0, %v697
        %699 = vmatprep.mubr.f32.mxu0 %v255
        %700 = vmatmul.mubr.f32.gmra.mxu0 %v254
        %v701 = vpop.f32.mrf.mxu0
        %v702 = vadd.f32 0.0, %v701
        %v703 = vpop.f32.mrf.mxu0
        %v704 = vadd.f32 0.0, %v703
        %705 = vdwg.mxu0
        %v706 = vmul.f32 %v451, %v451
        %v707 = vmul.f32 %v453, %v453
        %v708 = vmul.f32 %v457, %v457
        %v709 = vmul.f32 %v459, %v459
        %v710 = vmul.f32 %v463, %v463
        %v711 = vmul.f32 %v465, %v465
        %v712 = vmul.f32 %v469, %v469
        %v713 = vmul.f32 %v471, %v471
        %v714 = vmul.f32 %v475, %v475
        %v715 = vmul.f32 %v477, %v477
        %v716 = vmul.f32 %v481, %v481
        %v717 = vmul.f32 %v483, %v483
        %v718 = vmul.f32 %v487, %v487
        %v719 = vmul.f32 %v489, %v489
        %v720 = vmul.f32 %v493, %v493
        %v721 = vmul.f32 %v495, %v495
        %v722 = vmul.f32 %v499, %v499
        %v723 = vmul.f32 %v501, %v501
        %v724 = vmul.f32 %v505, %v505
        %v725 = vmul.f32 %v507, %v507
        %v726 = vmul.f32 %v511, %v511
        %v727 = vmul.f32 %v513, %v513
        %v728 = vmul.f32 %v517, %v517
        %v729 = vmul.f32 %v519, %v519
        %v730 = vmul.f32 %v523, %v523
        %v731 = vmul.f32 %v525, %v525
        %v732 = vmul.f32 %v529, %v529
        %v733 = vmul.f32 %v531, %v531
        %v734 = vmul.f32 %v535, %v535
        %v735 = vmul.f32 %v537, %v537
        %v736 = vmul.f32 %v541, %v541
        %v737 = vmul.f32 %v543, %v543
        %v738 = vmul.f32 %v612, %v612
        %v739 = vmul.f32 %v614, %v614
        %v740 = vmul.f32 %v618, %v618
        %v741 = vmul.f32 %v620, %v620
        %v742 = vmul.f32 %v624, %v624
        %v743 = vmul.f32 %v626, %v626
        %v744 = vmul.f32 %v630, %v630
        %v745 = vmul.f32 %v632, %v632
        %v746 = vmul.f32 %v636, %v636
        %v747 = vmul.f32 %v638, %v638
        %v748 = vmul.f32 %v642, %v642
        %v749 = vmul.f32 %v644, %v644
        %v750 = vmul.f32 %v648, %v648
        %v751 = vmul.f32 %v650, %v650
        %v752 = vmul.f32 %v654, %v654
        %v753 = vmul.f32 %v656, %v656
        %v754 = vmul.f32 %v660, %v660
        %v755 = vmul.f32 %v662, %v662
        %v756 = vmul.f32 %v666, %v666
        %v757 = vmul.f32 %v668, %v668
        %v758 = vmul.f32 %v672, %v672
        %v759 = vmul.f32 %v674, %v674
        %v760 = vmul.f32 %v678, %v678
        %v761 = vmul.f32 %v680, %v680
        %v762 = vmul.f32 %v684, %v684
        %v763 = vmul.f32 %v686, %v686
        %v764 = vmul.f32 %v690, %v690
        %v765 = vmul.f32 %v692, %v692
        %v766 = vmul.f32 %v696, %v696
        %v767 = vmul.f32 %v698, %v698
        %v768 = vmul.f32 %v702, %v702
        %v769 = vmul.f32 %v704, %v704
        %v770 = vadd.f32 %v706, %v738
        %v771 = vadd.f32 %v707, %v739
        %v772 = vadd.f32 %v708, %v740
        %v773 = vadd.f32 %v709, %v741
        %v774 = vadd.f32 %v710, %v742
        %v775 = vadd.f32 %v711, %v743
        %v776 = vadd.f32 %v712, %v744
        %v777 = vadd.f32 %v713, %v745
        %v778 = vadd.f32 %v714, %v746
        %v779 = vadd.f32 %v715, %v747
        %v780 = vadd.f32 %v716, %v748
        %v781 = vadd.f32 %v717, %v749
        %v782 = vadd.f32 %v718, %v750
        %v783 = vadd.f32 %v719, %v751
        %v784 = vadd.f32 %v720, %v752
        %v785 = vadd.f32 %v721, %v753
        %v786 = vadd.f32 %v722, %v754
        %v787 = vadd.f32 %v723, %v755
        %v788 = vadd.f32 %v724, %v756
        %v789 = vadd.f32 %v725, %v757
        %v790 = vadd.f32 %v726, %v758
        %v791 = vadd.f32 %v727, %v759
        %v792 = vadd.f32 %v728, %v760
        %v793 = vadd.f32 %v729, %v761
        %v794 = vadd.f32 %v730, %v762
        %v795 = vadd.f32 %v731, %v763
        %v796 = vadd.f32 %v732, %v764
        %v797 = vadd.f32 %v733, %v765
        %v798 = vadd.f32 %v734, %v766
        %v799 = vadd.f32 %v735, %v767
        %v800 = vadd.f32 %v736, %v768
        %v801 = vadd.f32 %v737, %v769
        %v802 = vld [vmem:[%s2] sm:$0xff]
        %v803 = vld [vmem:[%s2 + $0x8] sm:$0xff]
        %v804 = vld [vmem:[%s2 + $0x10] sm:$0xff]
        %v805 = vld [vmem:[%s2 + $0x18] sm:$0xff]
        %v806 = vld [vmem:[%s2 + $0x20] sm:$0xff]
        %v807 = vld [vmem:[%s2 + $0x28] sm:$0xff]
        %v808 = vld [vmem:[%s2 + $0x30] sm:$0xff]
        %v809 = vld [vmem:[%s2 + $0x38] sm:$0xff]
        %v810 = vld [vmem:[%s2 + $0x40] sm:$0xff]
        %v811 = vld [vmem:[%s2 + $0x48] sm:$0xff]
        %v812 = vld [vmem:[%s2 + $0x50] sm:$0xff]
        %v813 = vld [vmem:[%s2 + $0x58] sm:$0xff]
        %v814 = vld [vmem:[%s2 + $0x60] sm:$0xff]
        %v815 = vld [vmem:[%s2 + $0x68] sm:$0xff]
        %v816 = vld [vmem:[%s2 + $0x70] sm:$0xff]
        %v817 = vld [vmem:[%s2 + $0x78] sm:$0xff]
        %v818 = vld [vmem:[%s2 + $0x80] sm:$0xff]
        %v819 = vld [vmem:[%s2 + $0x88] sm:$0xff]
        %v820 = vld [vmem:[%s2 + $0x90] sm:$0xff]
        %v821 = vld [vmem:[%s2 + $0x98] sm:$0xff]
        %v822 = vld [vmem:[%s2 + $0xa0] sm:$0xff]
        %v823 = vld [vmem:[%s2 + $0xa8] sm:$0xff]
        %v824 = vld [vmem:[%s2 + $0xb0] sm:$0xff]
        %v825 = vld [vmem:[%s2 + $0xb8] sm:$0xff]
        %v826 = vld [vmem:[%s2 + $0xc0] sm:$0xff]
        %v827 = vld [vmem:[%s2 + $0xc8] sm:$0xff]
        %v828 = vld [vmem:[%s2 + $0xd0] sm:$0xff]
        %v829 = vld [vmem:[%s2 + $0xd8] sm:$0xff]
        %v830 = vld [vmem:[%s2 + $0xe0] sm:$0xff]
        %v831 = vld [vmem:[%s2 + $0xe8] sm:$0xff]
        %v832 = vld [vmem:[%s2 + $0xf0] sm:$0xff]
        %v833 = vld [vmem:[%s2 + $0xf8] sm:$0xff]
        %834 = vmatprep.subr.mxu0 0.0
        %835 = vmatpush1.msra.mxu0 %v817
        %836 = vmatprep.subr.mxu0 0.0
        %837 = vmatpush1.msra.mxu0 %v816
        %838 = vmatprep.subr.mxu0 0.0
        %839 = vmatpush1.msra.mxu0 %v815
        %840 = vmatprep.subr.mxu0 0.0
        %841 = vmatpush1.msra.mxu0 %v814
        %842 = vmatprep.subr.mxu0 0.0
        %843 = vmatpush1.msra.mxu0 %v813
        %844 = vmatprep.subr.mxu0 0.0
        %845 = vmatpush1.msra.mxu0 %v812
        %846 = vmatprep.subr.mxu0 0.0
        %847 = vmatpush1.msra.mxu0 %v811
        %848 = vmatprep.subr.mxu0 0.0
        %849 = vmatpush1.msra.mxu0 %v810
        %850 = vmatprep.subr.mxu0 0.0
        %851 = vmatpush1.msra.mxu0 %v809
        %852 = vmatprep.subr.mxu0 0.0
        %853 = vmatpush1.msra.mxu0 %v808
        %854 = vmatprep.subr.mxu0 0.0
        %855 = vmatpush1.msra.mxu0 %v807
        %856 = vmatprep.subr.mxu0 0.0
        %857 = vmatpush1.msra.mxu0 %v806
        %858 = vmatprep.subr.mxu0 0.0
        %859 = vmatpush1.msra.mxu0 %v805
        %860 = vmatprep.subr.mxu0 0.0
        %861 = vmatpush1.msra.mxu0 %v804
        %862 = vmatprep.subr.mxu0 0.0
        %863 = vmatpush1.msra.mxu0 %v803
        %864 = vmatprep.subr.mxu0 0.0
        %865 = vmatpush1.msra.mxu0 %v802
        %866 = vmatprep.subr.mxu0 0.0
        %867 = vmatpush2.msra.mxu0 %v833
        %868 = vmatprep.subr.mxu0 0.0
        %869 = vmatpush2.msra.mxu0 %v832
        %870 = vmatprep.subr.mxu0 0.0
        %871 = vmatpush2.msra.mxu0 %v831
        %872 = vmatprep.subr.mxu0 0.0
        %873 = vmatpush2.msra.mxu0 %v830
        %874 = vmatprep.subr.mxu0 0.0
        %875 = vmatpush2.msra.mxu0 %v829
        %876 = vmatprep.subr.mxu0 0.0
        %877 = vmatpush2.msra.mxu0 %v828
        %878 = vmatprep.subr.mxu0 0.0
        %879 = vmatpush2.msra.mxu0 %v827
        %880 = vmatprep.subr.mxu0 0.0
        %881 = vmatpush2.msra.mxu0 %v826
        %882 = vmatprep.subr.mxu0 0.0
        %883 = vmatpush2.msra.mxu0 %v825
        %884 = vmatprep.subr.mxu0 0.0
        %885 = vmatpush2.msra.mxu0 %v824
        %886 = vmatprep.subr.mxu0 0.0
        %887 = vmatpush2.msra.mxu0 %v823
        %888 = vmatprep.subr.mxu0 0.0
        %889 = vmatpush2.msra.mxu0 %v822
        %890 = vmatprep.subr.mxu0 0.0
        %891 = vmatpush2.msra.mxu0 %v821
        %892 = vmatprep.subr.mxu0 0.0
        %893 = vmatpush2.msra.mxu0 %v820
        %894 = vmatprep.subr.mxu0 0.0
        %895 = vmatpush2.msra.mxu0 %v819
        %896 = vmatprep.subr.mxu0 0.0
        %897 = vmatpush2.msra.mxu0 %v818
        %898 = vmatprep.mubr.f32.mxu0 %v771
        %899 = vmatmul.mubr.f32.gmra.mxu0 %v770
        %v900 = vpop.f32.mrf.mxu0
        %v901 = vadd.f32 0.0, %v900
        %v902 = vpop.f32.mrf.mxu0
        %903 = vmatprep.mubr.f32.mxu0 %v773
        %904 = vmatmul.mubr.f32.gmra.mxu0 %v772
        %v905 = vpop.f32.mrf.mxu0
        %v906 = vadd.f32 0.0, %v905
        %v907 = vpop.f32.mrf.mxu0
        %908 = vmatprep.mubr.f32.mxu0 %v775
        %909 = vmatmul.mubr.f32.gmra.mxu0 %v774
        %v910 = vpop.f32.mrf.mxu0
        %v911 = vadd.f32 0.0, %v910
        %v912 = vpop.f32.mrf.mxu0
        %913 = vmatprep.mubr.f32.mxu0 %v777
        %914 = vmatmul.mubr.f32.gmra.mxu0 %v776
        %v915 = vpop.f32.mrf.mxu0
        %v916 = vadd.f32 0.0, %v915
        %v917 = vpop.f32.mrf.mxu0
        %918 = vmatprep.mubr.f32.mxu0 %v779
        %919 = vmatmul.mubr.f32.gmra.mxu0 %v778
        %v920 = vpop.f32.mrf.mxu0
        %v921 = vadd.f32 0.0, %v920
        %v922 = vpop.f32.mrf.mxu0
        %923 = vmatprep.mubr.f32.mxu0 %v781
        %924 = vmatmul.mubr.f32.gmra.mxu0 %v780
        %v925 = vpop.f32.mrf.mxu0
        %v926 = vadd.f32 0.0, %v925
        %v927 = vpop.f32.mrf.mxu0
        %928 = vmatprep.mubr.f32.mxu0 %v783
        %929 = vmatmul.mubr.f32.gmra.mxu0 %v782
        %v930 = vpop.f32.mrf.mxu0
        %v931 = vadd.f32 0.0, %v930
        %v932 = vpop.f32.mrf.mxu0
        %933 = vmatprep.mubr.f32.mxu0 %v785
        %934 = vmatmul.mubr.f32.gmra.mxu0 %v784
        %v935 = vpop.f32.mrf.mxu0
        %v936 = vadd.f32 0.0, %v935
        %v937 = vpop.f32.mrf.mxu0
        %938 = vmatprep.mubr.f32.mxu0 %v787
        %939 = vmatmul.mubr.f32.gmra.mxu0 %v786
        %v940 = vpop.f32.mrf.mxu0
        %v941 = vadd.f32 0.0, %v940
        %v942 = vpop.f32.mrf.mxu0
        %943 = vmatprep.mubr.f32.mxu0 %v789
        %944 = vmatmul.mubr.f32.gmra.mxu0 %v788
        %v945 = vpop.f32.mrf.mxu0
        %v946 = vadd.f32 0.0, %v945
        %v947 = vpop.f32.mrf.mxu0
        %948 = vmatprep.mubr.f32.mxu0 %v791
        %949 = vmatmul.mubr.f32.gmra.mxu0 %v790
        %v950 = vpop.f32.mrf.mxu0
        %v951 = vadd.f32 0.0, %v950
        %v952 = vpop.f32.mrf.mxu0
        %953 = vmatprep.mubr.f32.mxu0 %v793
        %954 = vmatmul.mubr.f32.gmra.mxu0 %v792
        %v955 = vpop.f32.mrf.mxu0
        %v956 = vadd.f32 0.0, %v955
        %v957 = vpop.f32.mrf.mxu0
        %958 = vmatprep.mubr.f32.mxu0 %v795
        %959 = vmatmul.mubr.f32.gmra.mxu0 %v794
        %v960 = vpop.f32.mrf.mxu0
        %v961 = vadd.f32 0.0, %v960
        %v962 = vpop.f32.mrf.mxu0
        %963 = vmatprep.mubr.f32.mxu0 %v797
        %964 = vmatmul.mubr.f32.gmra.mxu0 %v796
        %v965 = vpop.f32.mrf.mxu0
        %v966 = vadd.f32 0.0, %v965
        %v967 = vpop.f32.mrf.mxu0
        %968 = vmatprep.mubr.f32.mxu0 %v799
        %969 = vmatmul.mubr.f32.gmra.mxu0 %v798
        %v970 = vpop.f32.mrf.mxu0
        %v971 = vadd.f32 0.0, %v970
        %v972 = vpop.f32.mrf.mxu0
        %973 = vmatprep.mubr.f32.mxu0 %v801
        %974 = vmatmul.mubr.f32.gmra.mxu0 %v800
        %v975 = vpop.f32.mrf.mxu0
        %v976 = vadd.f32 0.0, %v975
        %v977 = vpop.f32.mrf.mxu0
        %978 = vdwg.mxu0
        %979 = vxpose.xlu0.b32.start [1/16] %v901, 128
        %980 = vxpose.xlu0.b32.cont [2/16] %v906, 128
        %981 = vxpose.xlu0.b32.cont [3/16] %v911, 128
        %982 = vxpose.xlu0.b32.cont [4/16] %v916, 128
        %983 = vxpose.xlu0.b32.cont [5/16] %v921, 128
        %984 = vxpose.xlu0.b32.cont [6/16] %v926, 128
        %985 = vxpose.xlu0.b32.cont [7/16] %v931, 128
        %986 = vxpose.xlu0.b32.cont [8/16] %v936, 128
        %987 = vxpose.xlu0.b32.cont [9/16] %v941, 128
        %988 = vxpose.xlu0.b32.cont [10/16] %v946, 128
        %989 = vxpose.xlu0.b32.cont [11/16] %v951, 128
        %990 = vxpose.xlu0.b32.cont [12/16] %v956, 128
        %991 = vxpose.xlu0.b32.cont [13/16] %v961, 128
        %992 = vxpose.xlu0.b32.cont [14/16] %v966, 128
        %993 = vxpose.xlu0.b32.cont [15/16] %v971, 128
        %994 = vxpose.xlu0.b32.end [16/16] %v976, 128
        %v995 = vpop.trf.xlu0
        %v996 = vpop.trf.xlu0
        %v997 = vpop.trf.xlu0
        %v998 = vpop.trf.xlu0
        %v999 = vpop.trf.xlu0
        %v1000 = vpop.trf.xlu0
        %v1001 = vpop.trf.xlu0
        %v1002 = vpop.trf.xlu0
        %v1003 = vpop.trf.xlu0
        %v1004 = vpop.trf.xlu0
        %v1005 = vpop.trf.xlu0
        %v1006 = vpop.trf.xlu0
        %v1007 = vpop.trf.xlu0
        %v1008 = vpop.trf.xlu0
        %v1009 = vpop.trf.xlu0
        %v1010 = vpop.trf.xlu0
        %1011 = vst [vmem:[%s222] sm:$0xff] %v995
        %1012 = vst [vmem:[%s222 + $0x8] sm:$0xff] %v996
        %1013 = vst [vmem:[%s222 + $0x10] sm:$0xff] %v997
        %1014 = vst [vmem:[%s222 + $0x18] sm:$0xff] %v998
        %s1015 = sand.u32 %s113, 1
        %s1016 = scalar_lea.sflag [#allocation4], %s1015
        %s1017 = sand.u32 %s113, 1
        %s1018 = smul.addr %s1017, 32
        %s1019 = scalar_lea.vmem [#allocation7], %s1018
        // Predicated region
        $region41: #{tpu_custom_call.1} parent=31 // pred_check
          %p1020 = pneg %p123
        $region42: #{tpu_custom_call.1} parent=31 // pred_check_branch
          %1022 = sbr.rel (%p1020) target = $region44
        $region43: #{tpu_custom_call.1} parent=31 // pred_region
          %s1024 = ssub.s32 512, 512
          %1025 = vsyncadd %s1016, %s1024
          %s1026 = smul.addr %s25, 4
          %s1027 = sadd.s32 %s26, %s1026
          %s1028 = smul.addr %s1027, 128
          %s1029 = scalar_lea.hbm %s3, %s1028
          %s1030 = sshll.u32 %s1019, 4
          %s1031 = int_to_ptr.vmem [resolvable:$true] %s1030
          %1036 = dma.vmem_to_hbm [thread:$0]  %s1031, 512, %s1029, %s1016, 128, 128, 8
        $region44: #{tpu_custom_call.1} parent=31 // pred_fallthru
          _
      $region32: #{tpu_custom_call.1} parent=5 // pred_fallthru
        _
      %p1037 = scmp.le.s32.totalorder 2, %s16
      // Predicated region
      $region45: #{tpu_custom_call.1} parent=5 // pred_check
        %p1038 = pneg %p1037
      $region46: #{tpu_custom_call.1} parent=5 // pred_check_branch
        %1040 = sbr.rel (%p1038) target = $region48
      $region47: #{tpu_custom_call.1} parent=5 // pred_region
        %s1041 = ssub.s32 %s16, 2
        // Predicated region
        $region49: #{tpu_custom_call.1} parent=47 // pred_check
          %p1042 = pneg %p129
        $region50: #{tpu_custom_call.1} parent=47 // pred_check_branch
          %1044 = sbr.rel (%p1042) target = $region52
        $region51: #{tpu_custom_call.1} parent=47 // pred_region
          %s1045 = sand.u32 %s114, 1
          %s1046 = scalar_lea.sflag [#allocation4], %s1045
          %s1047 = sand.u32 %s114, 1
          %s1048 = smul.addr %s1047, 32
          %s1049 = scalar_lea.vmem [#allocation7], %s1048
          %1050 = dma.done %s1046, 512
        $region52: #{tpu_custom_call.1} parent=47 // pred_fallthru
          _
      $region48: #{tpu_custom_call.1} parent=5 // pred_fallthru
        _
    $region6: #{tpu_custom_call.1} parent=1 // loop_footer
      %s20 = sadd.s32 1, %s16
    $region7: #{tpu_custom_call.1} parent=1 // loop_footer_branch
      %15 = sbr.rel target = $region3
    $region8: #{tpu_custom_call.1} parent=1 // loop_exit
      _
    %1051 = vsyncpa [#allocation3], 1
    %s1052 = scalar_lea.sflag [#allocation3], 1
    %1053 = vsyncpa %s1052, 1
    %1054 = vsyncpa [#allocation6], 1
    %1055 = vsyncpa [#allocation4], 1
    %s1056 = scalar_lea.sflag [#allocation4], 1
    %1057 = vsyncpa %s1056, 1

</llo_original>
